<compile_context>
chip_gen: v5e
topology: v5e:2x2
jax: 0.10.0
libtpu: 0.0.40
codegen_flags: <defaults>
</compile_context>

<pallas_src>
import functools

import jax
import jax.numpy as jnp
from jax.experimental import pallas as pl
from jax.experimental.pallas import tpu as pltpu


def _head_kernel(x_ref, w_ref, o_ref, *, n_heads: int, head_size: int):
    # x_ref block: (1, T, C); w_ref block: (C, 3*NH*H); o_ref block: (1, T, NH*H).
    _, T, C = x_ref.shape
    H = head_size
    scale = float(H) ** -0.5  # k.shape[-1] ** -0.5

    # Fused QKV projection for all heads: one (T, C) x (C, 3*NH*H) MXU matmul.
    x2 = x_ref[0]                                                     # (T, C)
    qkv = jnp.dot(x2, w_ref[...], preferred_element_type=jnp.float32)  # (T, 3*NH*H)

    # Causal (tril) mask with a large finite negative (NaN-safe).
    row = jax.lax.broadcasted_iota(jnp.int32, (T, T), 0)
    col = jax.lax.broadcasted_iota(jnp.int32, (T, T), 1)
    causal = col <= row
    neg_big = jnp.float32(-1e30)

    for h in range(n_heads):                       # static, small unrolled loop
        off = 3 * H * h                            # per-head [Wq | Wk | Wv] layout
        q = qkv[:, off:off + H]                    # (T, H)
        k = qkv[:, off + H:off + 2 * H]            # (T, H)
        v = qkv[:, off + 2 * H:off + 3 * H]        # (T, H)

        # wei = q @ k^T : contract last dims directly, no materialized transpose.
        s = jax.lax.dot_general(q, k, (((1,), (1,)), ((), ())),
                                preferred_element_type=jnp.float32)   # (T, T)
        # Scale after the matmul (matches the reference op order exactly).
        s = jnp.where(causal, s * scale, neg_big)

        # Numerically stable softmax, normalized AFTER the PV matmul (T*H work).
        m = jnp.max(s, axis=-1, keepdims=True)
        p = jnp.exp(s - m)
        l = jnp.sum(p, axis=-1, keepdims=True)     # (T, 1)

        # dropout(p): identity (eval mode).

        o = jnp.dot(p, v, preferred_element_type=jnp.float32)         # (T, H)
        o_ref[0, :, h * H:(h + 1) * H] = (o / l).astype(o_ref.dtype)


def fuse_qkv_weights(head_weights):
    """One-time weight fusion: [(wq, wk, wv), ...] -> (C, 3*NH*H).

    Hoisted out of the forward pass (do this at parameter-init time) so the
    forward does not pay an extra HBM write + re-read of the weights.
    """
    cols = []
    for wq, wk, wv in head_weights:
        cols.extend([wq, wk, wv])
    return jnp.concatenate(cols, axis=1)


def head_forward(x, w_qkv, *, head_size, n_heads=1):
    """x: (B, T, C) f32; w_qkv: (C, 3*n_heads*head_size) -> (B, T, n_heads*head_size)."""
    B, T, C = x.shape
    H = head_size
    NH = n_heads
    assert w_qkv.shape == (C, 3 * NH * H)
    # Lane-density note: the output store is unmasked only when NH*H % 128 == 0
    # (e.g. head_size=128, or >=2 fused 64-wide heads). Smaller widths still
    # work, just with masked vst.

    kernel = functools.partial(_head_kernel, n_heads=NH, head_size=H)
    return pl.pallas_call(
        kernel,
        out_shape=jax.ShapeDtypeStruct((B, T, NH * H), x.dtype),
        grid_spec=pltpu.PrefetchScalarGridSpec(
            num_scalar_prefetch=0,
            grid=(B,),  # >= 2 parallel steps: dual-TC on v7x + DMA/compute overlap
            in_specs=[
                pl.BlockSpec((1, T, C), lambda b: (b, 0, 0)),
                # Constant block index -> fused weight stays resident in VMEM.
                pl.BlockSpec((C, 3 * NH * H), lambda b: (0, 0)),
            ],
            out_specs=pl.BlockSpec((1, T, NH * H), lambda b: (b, 0, 0)),
        ),
        compiler_params=pltpu.CompilerParams(
            dimension_semantics=("parallel",)),
    )(x, w_qkv)


def head_reference(x, wq, wk, wv):
    """Pure-JAX reference with identical semantics to the PyTorch `Head`."""
    q = x @ wq
    k = x @ wk
    v = x @ wv
    T = x.shape[1]
    H = wk.shape[1]
    wei = (q @ jnp.swapaxes(k, -2, -1)) * (H ** -0.5)
    tril = jnp.tril(jnp.ones((T, T), dtype=bool))
    wei = jnp.where(tril, wei, -jnp.inf)
    wei = jax.nn.softmax(wei, axis=-1)
    return wei @ v


if __name__ == "__main__":
    # Module-faithful shapes: n_embd=640, block_size=128; head_size=128
    # (n_embd / 5 heads) so q/k/v slices are 128-aligned and the output slab
    # is lane-dense; batch B=2 gives a 2-step parallel grid.
    B, T, C, H = 2, 128, 640, 128

    key = jax.random.PRNGKey(0)
    kx, kq, kk, kv = jax.random.split(key, 4)
    x = jax.random.normal(kx, (B, T, C), dtype=jnp.float32)
    wq = jax.random.normal(kq, (C, H), dtype=jnp.float32) * (C ** -0.5)
    wk = jax.random.normal(kk, (C, H), dtype=jnp.float32) * (C ** -0.5)
    wv = jax.random.normal(kv, (C, H), dtype=jnp.float32) * (C ** -0.5)

    # Tolerance covers DEFAULT-precision (bf16-input) matmul rounding
    # differences between the Mosaic kernel path and the XLA reference path.
    atol = rtol = 2e-2

    # --- Check 1: single Head (the module spec). ---
    w_qkv = fuse_qkv_weights([(wq, wk, wv)])           # done once, not per forward
    out = head_forward(x, w_qkv, head_size=H, n_heads=1)
    out = jax.block_until_ready(out)
    ref = head_reference(x, wq, wk, wv)
    assert out.shape == (B, T, H)
    assert jnp.allclose(out, ref, atol=atol, rtol=rtol), "single-head mismatch"

    # --- Check 2: two heads fused into one kernel (MultiHead building block):
    # x is read from HBM once for both heads, output written directly in
    # (B, T, 2*H) concat layout. ---
    kq2, kk2, kv2 = jax.random.split(jax.random.PRNGKey(1), 3)
    wq2 = jax.random.normal(kq2, (C, H), dtype=jnp.float32) * (C ** -0.5)
    wk2 = jax.random.normal(kk2, (C, H), dtype=jnp.float32) * (C ** -0.5)
    wv2 = jax.random.normal(kv2, (C, H), dtype=jnp.float32) * (C ** -0.5)
    w_qkv2 = fuse_qkv_weights([(wq, wk, wv), (wq2, wk2, wv2)])
    out2 = head_forward(x, w_qkv2, head_size=H, n_heads=2)
    out2 = jax.block_until_ready(out2)
    ref2 = jnp.concatenate([head_reference(x, wq, wk, wv),
                            head_reference(x, wq2, wk2, wv2)], axis=-1)
    assert out2.shape == (B, T, 2 * H)
    assert jnp.allclose(out2, ref2, atol=atol, rtol=rtol), "fused-head mismatch"

    print("KERNEL_OK")
</pallas_src>

<mosaic_0001>
module attributes {stable_mosaic.version = 11 : i64} {
  func.func @_head_kernel(%arg0: i32, %arg1: memref<1x128x640xf32, #tpu.memory_space<vmem>>, %arg2: memref<640x384xf32, #tpu.memory_space<vmem>>, %arg3: memref<1x128x128xf32, #tpu.memory_space<vmem>>) attributes {dimension_semantics = [#tpu.dimension_semantics<parallel>], iteration_bounds = array<i64: 2>, scalar_prefetch = 0 : i64, scratch_operands = 0 : i64, tpu.core_type = #tpu.core_type<tc>, window_params = [{transform_indices = @transform_0, window_bounds = array<i64: 1, 128, 640>}, {pipeline_mode = #tpu.pipeline_mode<synchronous>, transform_indices = @transform_1, window_bounds = array<i64: 640, 384>}, {transform_indices = @transform_2, window_bounds = array<i64: 1, 128, 128>}]} {
    %c0 = arith.constant 0 : index
    %c0_0 = arith.constant 0 : index
    %c0_1 = arith.constant 0 : index
    %0 = vector.load %arg1[%c0, %c0_0, %c0_1] : memref<1x128x640xf32, #tpu.memory_space<vmem>>, vector<1x128x640xf32>
    %1 = vector.shape_cast %0 : vector<1x128x640xf32> to vector<128x640xf32>
    %c0_2 = arith.constant 0 : index
    %c0_3 = arith.constant 0 : index
    %2 = vector.load %arg2[%c0_2, %c0_3] : memref<640x384xf32, #tpu.memory_space<vmem>>, vector<640x384xf32>
    %cst = arith.constant dense<0.000000e+00> : vector<128x384xf32>
    %3 = tpu.matmul %1, %2, %cst {dimension_numbers = #tpu.dot_dimension_numbers<[1], [0], [0], [1], [0, 0, 1, 1], [], []>} : vector<128x640xf32>, vector<640x384xf32>, vector<128x384xf32> -> vector<128x384xf32>
    %4 = tpu.iota {dimensions = array<i32: 0>} : vector<128x128xi32>
    %5 = tpu.iota {dimensions = array<i32: 1>} : vector<128x128xi32>
    %6 = arith.cmpi sle, %5, %4 : vector<128x128xi32>
    %7 = vector.extract_strided_slice %3 {offsets = [0, 0], sizes = [128, 128], strides = [1, 1]} : vector<128x384xf32> to vector<128x128xf32>
    %8 = vector.extract_strided_slice %3 {offsets = [0, 128], sizes = [128, 128], strides = [1, 1]} : vector<128x384xf32> to vector<128x128xf32>
    %9 = vector.extract_strided_slice %3 {offsets = [0, 256], sizes = [128, 128], strides = [1, 1]} : vector<128x384xf32> to vector<128x128xf32>
    %cst_4 = arith.constant dense<0.000000e+00> : vector<128x128xf32>
    %10 = tpu.matmul %7, %8, %cst_4 {dimension_numbers = #tpu.dot_dimension_numbers<[1], [1], [0], [0], [0, 0, 1, 0], [], []>} : vector<128x128xf32>, vector<128x128xf32>, vector<128x128xf32> -> vector<128x128xf32>
    %cst_5 = arith.constant 0.0883883461 : f32
    %11 = vector.broadcast %cst_5 : f32 to vector<128x128xf32>
    %12 = arith.mulf %10, %11 : vector<128x128xf32>
    %cst_6 = arith.constant -1.000000e+30 : f32
    %13 = vector.broadcast %cst_6 : f32 to vector<128x128xf32>
    %14 = arith.select %6, %12, %13 : vector<128x128xi1>, vector<128x128xf32>
    %cst_7 = arith.constant dense<0xFF800000> : vector<128xf32>
    %15 = vector.multi_reduction <maximumf>, %14, %cst_7 [1] : vector<128x128xf32> to vector<128xf32>
    %16 = vector.shape_cast %15 : vector<128xf32> to vector<128x1xf32>
    %17 = vector.broadcast %16 : vector<128x1xf32> to vector<128x128xf32>
    %18 = arith.subf %14, %17 : vector<128x128xf32>
    %19 = math.exp %18 : vector<128x128xf32>
    %cst_8 = arith.constant dense<0.000000e+00> : vector<128xf32>
    %20 = vector.multi_reduction <add>, %19, %cst_8 [1] : vector<128x128xf32> to vector<128xf32>
    %21 = vector.shape_cast %20 : vector<128xf32> to vector<128x1xf32>
    %cst_9 = arith.constant dense<0.000000e+00> : vector<128x128xf32>
    %22 = tpu.matmul %19, %9, %cst_9 {dimension_numbers = #tpu.dot_dimension_numbers<[1], [0], [0], [1], [0, 0, 1, 1], [], []>} : vector<128x128xf32>, vector<128x128xf32>, vector<128x128xf32> -> vector<128x128xf32>
    %23 = vector.broadcast %21 : vector<128x1xf32> to vector<128x128xf32>
    %24 = arith.divf %22, %23 : vector<128x128xf32>
    %c0_10 = arith.constant 0 : index
    %c0_11 = arith.constant 0 : index
    %c0_12 = arith.constant 0 : index
    %25 = vector.load %arg3[%c0_10, %c0_11, %c0_12] : memref<1x128x128xf32, #tpu.memory_space<vmem>>, vector<1x128x128xf32>
    %26 = vector.shape_cast %25 : vector<1x128x128xf32> to vector<128x128xf32>
    %27 = vector.shape_cast %24 : vector<128x128xf32> to vector<1x128x128xf32>
    tpu.vector_store %arg3[%c0_10, %c0_11, %c0_12], %27 {strides = array<i32>} : memref<1x128x128xf32, #tpu.memory_space<vmem>>, vector<1x128x128xf32>,
    return
  }
  func.func @transform_0(%arg0: i32) -> (i32, i32, i32) {
    %c0_i32 = arith.constant 0 : i32
    %c0_i32_0 = arith.constant 0 : i32
    %c0_i32_1 = arith.constant 0 : i32
    return %arg0, %c0_i32, %c0_i32_0 : i32, i32, i32
  }
  func.func @transform_1(%arg0: i32) -> (i32, i32) {
    %c0_i32 = arith.constant 0 : i32
    %c0_i32_0 = arith.constant 0 : i32
    %c0_i32_1 = arith.constant 0 : i32
    return %c0_i32, %c0_i32_0 : i32, i32
  }
  func.func @transform_2(%arg0: i32) -> (i32, i32, i32) {
    %c0_i32 = arith.constant 0 : i32
    %c0_i32_0 = arith.constant 0 : i32
    %c0_i32_1 = arith.constant 0 : i32
    return %arg0, %c0_i32, %c0_i32_0 : i32, i32, i32
  }
}

</mosaic_0001>

<llo_original>
// kernel: tpu_custom_call.1
$region0: #{tpu_custom_call.1}
  #allocation0 [shape = 'u32[]', space=smem, size = 0x4, offset = 0x4, fixed_abs, tag = 'smem constant byte address 0x4 - core index']
  #allocation1 [shape = 'u32[72,128]{1,0:T(1,128)}', space=vmem, size = 0x9000, scoped, tag = 'internal scratch']
  %s0 = inlined_call_operand.hbm [shape: f32[2,128,640], index: 0, kind: input, shape index: {}]
  %s1 = inlined_call_operand.hbm [shape: f32[640,384], index: 1, kind: input, shape index: {}]
  %s2 = inlined_call_operand.hbm [shape: f32[2,128,128], index: 2, kind: output, shape index: {}]
  %s3 = sld [smem:[#allocation0]]
  $region49: #{tpu_custom_call.1} parent=0
    _
  %s5 = ssub.s32 1, %s3
  %s6 = scalar_select 0, %s5, %s3
  $region1: #{tpu_custom_call.1} parent=0
    #allocation2 [shape = 'u8[655360]{0}', space=vmem, size = 0xa0000, scoped, tag = 'input window, operand 0']
    #allocation3 [shape = 's32[2]{0}', space=sflag, size = 0x8, scoped, tag = 'scoped memory for tpu_custom_call.1']
    #allocation4 [shape = 's32[2]{0}', space=sflag, size = 0x8, scoped, tag = 'scoped memory for tpu_custom_call.1']
    #allocation5 [shape = 'u8[983040]{0}', space=vmem, size = 0xf0000, scoped, tag = 'input window, operand 1, single buffered']
    #allocation6 [shape = 's32[1]{0}', space=sflag, size = 0x4, scoped, tag = 'scoped memory for tpu_custom_call.1']
    #allocation7 [shape = 'u8[131072]{0}', space=vmem, size = 0x20000, scoped, tag = 'output window, operand 0']
    %7 = vsyncpa [#allocation3], 0
    %s8 = scalar_lea.sflag [#allocation3], 1
    %9 = vsyncpa %s8, 0
    %10 = vsyncpa [#allocation6], 0
    %11 = vsyncpa [#allocation4], 0
    %s12 = scalar_lea.sflag [#allocation4], 1
    %13 = vsyncpa %s12, 0
    loop: start=0, step=1, limit=4
    $region2: #{tpu_custom_call.1} parent=1 // loop_pre_header
      _
    $region3: #{tpu_custom_call.1} parent=1 // loop_header
      %s15 = sphi 0, %s19
      %p16 = scmp.ge.s32.totalorder %s15, 4
      %s25 = sphi 0, %s27
      %s28 = sphi 0, %s25
      %s29 = sphi 0, %s28
      %s45 = sphi 0, %s29
      %s49 = sphi 0, %s49
      %s51 = sphi 0, %s49
      %s52 = sphi 0, %s51
      %s66 = sphi 0, %s52
      %s72 = sphi 0, %s74
      %s75 = sphi 0, %s72
      %s76 = sphi 0, %s75
      %s92 = sphi 0, %s76
    $region4: #{tpu_custom_call.1} parent=1 // loop_header_branch
      %18 = sbr.rel (%p16) target = $region8
    $region5: #{tpu_custom_call.1} parent=1 // loop_body
      %s20 = ssub.s32 %s15, 1
      %s21 = ssub.s32 %s15, 2
      %s22 = sadd.s32 %s15, 1
      %s23 = ssub.s32 %s15, %s22
      %p24 = scmp.eq.s32.totalorder %s23, 0
      %s26 = sadd.s32 %s25, 1
      %s27 = scalar_select %p24, %s25, %s26
      %p30 = pneg %p24
      %p31 = scmp.eq.s32.totalorder %s15, 1
      %p32 = por %p30, %p31
      %p33 = scmp.ne.s32.totalorder %s25, %s28
      %p34 = scmp.eq.s32.totalorder %s15, 0
      %p35 = por %p33, %p34
      %p36 = scmp.ne.s32.totalorder %s25, %s28
      %p37 = scmp.eq.s32.totalorder %s20, 1
      %p38 = por %p36, %p37
      %p39 = scmp.ne.s32.totalorder %s28, %s29
      %p40 = scmp.eq.s32.totalorder %s20, 0
      %p41 = por %p39, %p40
      %p42 = scmp.ne.s32.totalorder %s28, %s29
      %p43 = scmp.eq.s32.totalorder %s21, 1
      %p44 = por %p42, %p43
      %p46 = scmp.ne.s32.totalorder %s29, %s45
      %p47 = scmp.eq.s32.totalorder %s21, 0
      %p48 = por %p46, %p47
      %s50 = sadd.s32 %s49, 1
      %p53 = scmp.eq.s32.totalorder %s15, 1
      %p54 = scmp.ne.s32.totalorder %s49, %s51
      %p55 = scmp.eq.s32.totalorder %s15, 0
      %p56 = por %p54, %p55
      %p57 = scmp.ne.s32.totalorder %s49, %s51
      %p58 = scmp.eq.s32.totalorder %s20, 1
      %p59 = por %p57, %p58
      %p60 = scmp.ne.s32.totalorder %s51, %s52
      %p61 = scmp.eq.s32.totalorder %s20, 0
      %p62 = por %p60, %p61
      %p63 = scmp.ne.s32.totalorder %s51, %s52
      %p64 = scmp.eq.s32.totalorder %s21, 1
      %p65 = por %p63, %p64
      %p67 = scmp.ne.s32.totalorder %s52, %s66
      %p68 = scmp.eq.s32.totalorder %s21, 0
      %p69 = por %p67, %p68
      %s70 = ssub.s32 %s15, %s22
      %p71 = scmp.eq.s32.totalorder %s70, 0
      %s73 = sadd.s32 %s72, 1
      %s74 = scalar_select %p71, %s72, %s73
      %p77 = pneg %p71
      %p78 = scmp.eq.s32.totalorder %s15, 1
      %p79 = por %p77, %p78
      %p80 = scmp.ne.s32.totalorder %s72, %s75
      %p81 = scmp.eq.s32.totalorder %s15, 0
      %p82 = por %p80, %p81
      %p83 = scmp.ne.s32.totalorder %s72, %s75
      %p84 = scmp.eq.s32.totalorder %s20, 1
      %p85 = por %p83, %p84
      %p86 = scmp.ne.s32.totalorder %s75, %s76
      %p87 = scmp.eq.s32.totalorder %s20, 0
      %p88 = por %p86, %p87
      %p89 = scmp.ne.s32.totalorder %s75, %s76
      %p90 = scmp.eq.s32.totalorder %s21, 1
      %p91 = por %p89, %p90
      %p93 = scmp.ne.s32.totalorder %s76, %s92
      %p94 = scmp.eq.s32.totalorder %s21, 0
      %p95 = por %p93, %p94
      %p96 = scmp.le.s32.totalorder 1, %s15
      %p97 = scmp.lt.s32.totalorder %s15, 3
      %p98 = pnand %p96, %p97
      %p99 = pneg %p98
      // Predicated region
      $region9: #{tpu_custom_call.1} parent=5 // pred_check
        _
      $region10: #{tpu_custom_call.1} parent=5 // pred_check_branch
        %101 = sbr.rel (%p98) target = $region12
      $region11: #{tpu_custom_call.1} parent=5 // pred_region
        %s102 = ssub.s32 %s15, 1
        // Predicated region
        $region13: #{tpu_custom_call.1} parent=11 // pred_check
          %p103 = pneg %p62
        $region14: #{tpu_custom_call.1} parent=11 // pred_check_branch
          %105 = sbr.rel (%p103) target = $region16
        $region15: #{tpu_custom_call.1} parent=11 // pred_region
          %107 = vsyncadd [#allocation6], 0
          %s108 = sshll.u32 %s1, 4
          %s109 = int_to_ptr.hbm [resolvable:$true] %s108
          %s110 = sshll.u32 [#allocation5], 4
          %s111 = int_to_ptr.vmem [resolvable:$true] %s110
          %116 = dma.hbm_to_vmem [thread:$0]  %s109, 30720, %s111, [#allocation6], 384, 384, 24
        $region16: #{tpu_custom_call.1} parent=11 // pred_fallthru
          _
      $region12: #{tpu_custom_call.1} parent=5 // pred_fallthru
        _
      %p117 = scmp.lt.s32.totalorder %s15, 2
      // Predicated region
      $region17: #{tpu_custom_call.1} parent=5 // pred_check
        %p118 = pneg %p117
      $region18: #{tpu_custom_call.1} parent=5 // pred_check_branch
        %120 = sbr.rel (%p118) target = $region20
      $region19: #{tpu_custom_call.1} parent=5 // pred_region
        // Predicated region
        $region21: #{tpu_custom_call.1} parent=19 // pred_check
          %p121 = pneg %p35
        $region22: #{tpu_custom_call.1} parent=19 // pred_check_branch
          %123 = sbr.rel (%p121) target = $region24
        $region23: #{tpu_custom_call.1} parent=19 // pred_region
          %s124 = sand.u32 %s25, 1
          %s125 = scalar_lea.sflag [#allocation3], %s124
          %s126 = sand.u32 %s25, 1
          %s127 = smul.addr %s126, 640
          %s128 = scalar_lea.vmem [#allocation2], %s127
          %130 = vsyncadd %s125, 0
          %s131 = smul.addr %s15, 80
          %s132 = smul.addr %s131, 8
          %s133 = scalar_lea.hbm %s0, %s132
          %s134 = sshll.u32 %s133, 4
          %s135 = int_to_ptr.hbm [resolvable:$true] %s134
          %s136 = sshll.u32 %s128, 4
          %s137 = int_to_ptr.vmem [resolvable:$true] %s136
          %142 = dma.hbm_to_vmem [thread:$0]  %s135, 10240, %s137, %s125, 640, 640, 40
        $region24: #{tpu_custom_call.1} parent=19 // pred_fallthru
          _
      $region20: #{tpu_custom_call.1} parent=5 // pred_fallthru
        _
      %p143 = scmp.le.s32.totalorder 1, %s15
      %p144 = scmp.lt.s32.totalorder %s15, 3
      %p145 = pnand %p143, %p144
      %p146 = pneg %p145
      // Predicated region
      $region25: #{tpu_custom_call.1} parent=5 // pred_check
        _
      $region26: #{tpu_custom_call.1} parent=5 // pred_check_branch
        %148 = sbr.rel (%p145) target = $region28
      $region27: #{tpu_custom_call.1} parent=5 // pred_region
        %s149 = ssub.s32 %s15, 1
        %s150 = sand.u32 %s28, 1
        %s151 = scalar_lea.sflag [#allocation3], %s150
        %s152 = sand.u32 %s28, 1
        %s153 = smul.addr %s152, 640
        %s154 = scalar_lea.vmem [#allocation2], %s153
        // Predicated region
        $region29: #{tpu_custom_call.1} parent=27 // pred_check
          %p155 = pneg %p41
        $region30: #{tpu_custom_call.1} parent=27 // pred_check_branch
          %157 = sbr.rel (%p155) target = $region32
        $region31: #{tpu_custom_call.1} parent=27 // pred_region
          %159 = dma.done %s151, 10240
        $region32: #{tpu_custom_call.1} parent=27 // pred_fallthru
          _
        // Predicated region
        $region33: #{tpu_custom_call.1} parent=27 // pred_check
          %p160 = pneg %p62
        $region34: #{tpu_custom_call.1} parent=27 // pred_check_branch
          %162 = sbr.rel (%p160) target = $region36
        $region35: #{tpu_custom_call.1} parent=27 // pred_region
          %164 = dma.done [#allocation6], 30720
        $region36: #{tpu_custom_call.1} parent=27 // pred_fallthru
          _
        %s165 = sand.u32 %s28, 1
        %s166 = scalar_lea.sflag [#allocation3], %s165
        %s167 = sand.u32 %s28, 1
        %s168 = smul.addr %s167, 640
        %s169 = scalar_lea.vmem [#allocation2], %s168
        %p170 = pneg %p41
        %p171 = pneg %p38
        %p172 = pneg %p62
        %p173 = pneg %p59
        %p174 = pneg %p88
        %p175 = pneg %p85
        %s176 = sand.u32 %s75, 1
        %s177 = scalar_lea.sflag [#allocation4], %s176
        %s178 = sand.u32 %s75, 1
        %s179 = smul.addr %s178, 128
        %s180 = scalar_lea.vmem [#allocation7], %s179
        %v181 = vld [vmem:[%s154] sm:$0xff]
        %v182 = vld [vmem:[%s154 + $0x8] sm:$0xff]
        %v183 = vld [vmem:[%s154 + $0x10] sm:$0xff]
        %v184 = vld [vmem:[%s154 + $0x18] sm:$0xff]
        %v185 = vld [vmem:[%s154 + $0x20] sm:$0xff]
        %v186 = vld [vmem:[%s154 + $0x28] sm:$0xff]
        %v187 = vld [vmem:[%s154 + $0x30] sm:$0xff]
        %v188 = vld [vmem:[%s154 + $0x38] sm:$0xff]
        %v189 = vld [vmem:[%s154 + $0x40] sm:$0xff]
        %v190 = vld [vmem:[%s154 + $0x48] sm:$0xff]
        %v191 = vld [vmem:[%s154 + $0x50] sm:$0xff]
        %v192 = vld [vmem:[%s154 + $0x58] sm:$0xff]
        %v193 = vld [vmem:[%s154 + $0x60] sm:$0xff]
        %v194 = vld [vmem:[%s154 + $0x68] sm:$0xff]
        %v195 = vld [vmem:[%s154 + $0x70] sm:$0xff]
        %v196 = vld [vmem:[%s154 + $0x78] sm:$0xff]
        %v197 = vld [vmem:[%s154 + $0x80] sm:$0xff]
        %v198 = vld [vmem:[%s154 + $0x88] sm:$0xff]
        %v199 = vld [vmem:[%s154 + $0x90] sm:$0xff]
        %v200 = vld [vmem:[%s154 + $0x98] sm:$0xff]
        %v201 = vld [vmem:[%s154 + $0xa0] sm:$0xff]
        %v202 = vld [vmem:[%s154 + $0xa8] sm:$0xff]
        %v203 = vld [vmem:[%s154 + $0xb0] sm:$0xff]
        %v204 = vld [vmem:[%s154 + $0xb8] sm:$0xff]
        %v205 = vld [vmem:[%s154 + $0xc0] sm:$0xff]
        %v206 = vld [vmem:[%s154 + $0xc8] sm:$0xff]
        %v207 = vld [vmem:[%s154 + $0xd0] sm:$0xff]
        %v208 = vld [vmem:[%s154 + $0xd8] sm:$0xff]
        %v209 = vld [vmem:[%s154 + $0xe0] sm:$0xff]
        %v210 = vld [vmem:[%s154 + $0xe8] sm:$0xff]
        %v211 = vld [vmem:[%s154 + $0xf0] sm:$0xff]
        %v212 = vld [vmem:[%s154 + $0xf8] sm:$0xff]
        %v213 = vld [vmem:[%s154 + $0x100] sm:$0xff]
        %v214 = vld [vmem:[%s154 + $0x108] sm:$0xff]
        %v215 = vld [vmem:[%s154 + $0x110] sm:$0xff]
        %v216 = vld [vmem:[%s154 + $0x118] sm:$0xff]
        %v217 = vld [vmem:[%s154 + $0x120] sm:$0xff]
        %v218 = vld [vmem:[%s154 + $0x128] sm:$0xff]
        %v219 = vld [vmem:[%s154 + $0x130] sm:$0xff]
        %v220 = vld [vmem:[%s154 + $0x138] sm:$0xff]
        %v221 = vld [vmem:[%s154 + $0x140] sm:$0xff]
        %v222 = vld [vmem:[%s154 + $0x148] sm:$0xff]
        %v223 = vld [vmem:[%s154 + $0x150] sm:$0xff]
        %v224 = vld [vmem:[%s154 + $0x158] sm:$0xff]
        %v225 = vld [vmem:[%s154 + $0x160] sm:$0xff]
        %v226 = vld [vmem:[%s154 + $0x168] sm:$0xff]
        %v227 = vld [vmem:[%s154 + $0x170] sm:$0xff]
        %v228 = vld [vmem:[%s154 + $0x178] sm:$0xff]
        %v229 = vld [vmem:[%s154 + $0x180] sm:$0xff]
        %v230 = vld [vmem:[%s154 + $0x188] sm:$0xff]
        %v231 = vld [vmem:[%s154 + $0x190] sm:$0xff]
        %v232 = vld [vmem:[%s154 + $0x198] sm:$0xff]
        %v233 = vld [vmem:[%s154 + $0x1a0] sm:$0xff]
        %v234 = vld [vmem:[%s154 + $0x1a8] sm:$0xff]
        %v235 = vld [vmem:[%s154 + $0x1b0] sm:$0xff]
        %v236 = vld [vmem:[%s154 + $0x1b8] sm:$0xff]
        %v237 = vld [vmem:[%s154 + $0x1c0] sm:$0xff]
        %v238 = vld [vmem:[%s154 + $0x1c8] sm:$0xff]
        %v239 = vld [vmem:[%s154 + $0x1d0] sm:$0xff]
        %v240 = vld [vmem:[%s154 + $0x1d8] sm:$0xff]
        %v241 = vld [vmem:[%s154 + $0x1e0] sm:$0xff]
        %v242 = vld [vmem:[%s154 + $0x1e8] sm:$0xff]
        %v243 = vld [vmem:[%s154 + $0x1f0] sm:$0xff]
        %v244 = vld [vmem:[%s154 + $0x1f8] sm:$0xff]
        %v245 = vld [vmem:[%s154 + $0x200] sm:$0xff]
        %v246 = vld [vmem:[%s154 + $0x208] sm:$0xff]
        %v247 = vld [vmem:[%s154 + $0x210] sm:$0xff]
        %v248 = vld [vmem:[%s154 + $0x218] sm:$0xff]
        %v249 = vld [vmem:[%s154 + $0x220] sm:$0xff]
        %v250 = vld [vmem:[%s154 + $0x228] sm:$0xff]
        %v251 = vld [vmem:[%s154 + $0x230] sm:$0xff]
        %v252 = vld [vmem:[%s154 + $0x238] sm:$0xff]
        %v253 = vld [vmem:[%s154 + $0x240] sm:$0xff]
        %v254 = vld [vmem:[%s154 + $0x248] sm:$0xff]
        %v255 = vld [vmem:[%s154 + $0x250] sm:$0xff]
        %v256 = vld [vmem:[%s154 + $0x258] sm:$0xff]
        %v257 = vld [vmem:[%s154 + $0x260] sm:$0xff]
        %v258 = vld [vmem:[%s154 + $0x268] sm:$0xff]
        %v259 = vld [vmem:[%s154 + $0x270] sm:$0xff]
        %v260 = vld [vmem:[%s154 + $0x278] sm:$0xff]
        %v261 = vld [vmem:[#allocation5] sm:$0xff]
        %v262 = vld [vmem:[#allocation5 + $0x8] sm:$0xff]
        %v263 = vld [vmem:[#allocation5 + $0x10] sm:$0xff]
        %v264 = vld [vmem:[#allocation5 + $0x18] sm:$0xff]
        %v265 = vld [vmem:[#allocation5 + $0x20] sm:$0xff]
        %v266 = vld [vmem:[#allocation5 + $0x28] sm:$0xff]
        %v267 = vld [vmem:[#allocation5 + $0x30] sm:$0xff]
        %v268 = vld [vmem:[#allocation5 + $0x38] sm:$0xff]
        %v269 = vld [vmem:[#allocation5 + $0x40] sm:$0xff]
        %v270 = vld [vmem:[#allocation5 + $0x48] sm:$0xff]
        %v271 = vld [vmem:[#allocation5 + $0x50] sm:$0xff]
        %v272 = vld [vmem:[#allocation5 + $0x58] sm:$0xff]
        %v273 = vld [vmem:[#allocation5 + $0x60] sm:$0xff]
        %v274 = vld [vmem:[#allocation5 + $0x68] sm:$0xff]
        %v275 = vld [vmem:[#allocation5 + $0x70] sm:$0xff]
        %v276 = vld [vmem:[#allocation5 + $0x78] sm:$0xff]
        %v277 = vld [vmem:[#allocation5 + $0x80] sm:$0xff]
        %v278 = vld [vmem:[#allocation5 + $0x88] sm:$0xff]
        %v279 = vld [vmem:[#allocation5 + $0x90] sm:$0xff]
        %v280 = vld [vmem:[#allocation5 + $0x98] sm:$0xff]
        %v281 = vld [vmem:[#allocation5 + $0xa0] sm:$0xff]
        %v282 = vld [vmem:[#allocation5 + $0xa8] sm:$0xff]
        %v283 = vld [vmem:[#allocation5 + $0xb0] sm:$0xff]
        %v284 = vld [vmem:[#allocation5 + $0xb8] sm:$0xff]
        %v285 = vld [vmem:[#allocation5 + $0xc0] sm:$0xff]
        %v286 = vld [vmem:[#allocation5 + $0xc8] sm:$0xff]
        %v287 = vld [vmem:[#allocation5 + $0xd0] sm:$0xff]
        %v288 = vld [vmem:[#allocation5 + $0xd8] sm:$0xff]
        %v289 = vld [vmem:[#allocation5 + $0xe0] sm:$0xff]
        %v290 = vld [vmem:[#allocation5 + $0xe8] sm:$0xff]
        %v291 = vld [vmem:[#allocation5 + $0xf0] sm:$0xff]
        %v292 = vld [vmem:[#allocation5 + $0xf8] sm:$0xff]
        %v293 = vld [vmem:[#allocation5 + $0x100] sm:$0xff]
        %v294 = vld [vmem:[#allocation5 + $0x108] sm:$0xff]
        %v295 = vld [vmem:[#allocation5 + $0x110] sm:$0xff]
        %v296 = vld [vmem:[#allocation5 + $0x118] sm:$0xff]
        %v297 = vld [vmem:[#allocation5 + $0x120] sm:$0xff]
        %v298 = vld [vmem:[#allocation5 + $0x128] sm:$0xff]
        %v299 = vld [vmem:[#allocation5 + $0x130] sm:$0xff]
        %v300 = vld [vmem:[#allocation5 + $0x138] sm:$0xff]
        %v301 = vld [vmem:[#allocation5 + $0x140] sm:$0xff]
        %v302 = vld [vmem:[#allocation5 + $0x148] sm:$0xff]
        %v303 = vld [vmem:[#allocation5 + $0x150] sm:$0xff]
        %v304 = vld [vmem:[#allocation5 + $0x158] sm:$0xff]
        %v305 = vld [vmem:[#allocation5 + $0x160] sm:$0xff]
        %v306 = vld [vmem:[#allocation5 + $0x168] sm:$0xff]
        %v307 = vld [vmem:[#allocation5 + $0x170] sm:$0xff]
        %v308 = vld [vmem:[#allocation5 + $0x178] sm:$0xff]
        %v309 = vld [vmem:[#allocation5 + $0x180] sm:$0xff]
        %v310 = vld [vmem:[#allocation5 + $0x188] sm:$0xff]
        %v311 = vld [vmem:[#allocation5 + $0x190] sm:$0xff]
        %v312 = vld [vmem:[#allocation5 + $0x198] sm:$0xff]
        %v313 = vld [vmem:[#allocation5 + $0x1a0] sm:$0xff]
        %v314 = vld [vmem:[#allocation5 + $0x1a8] sm:$0xff]
        %v315 = vld [vmem:[#allocation5 + $0x1b0] sm:$0xff]
        %v316 = vld [vmem:[#allocation5 + $0x1b8] sm:$0xff]
        %v317 = vld [vmem:[#allocation5 + $0x1c0] sm:$0xff]
        %v318 = vld [vmem:[#allocation5 + $0x1c8] sm:$0xff]
        %v319 = vld [vmem:[#allocation5 + $0x1d0] sm:$0xff]
        %v320 = vld [vmem:[#allocation5 + $0x1d8] sm:$0xff]
        %v321 = vld [vmem:[#allocation5 + $0x1e0] sm:$0xff]
        %v322 = vld [vmem:[#allocation5 + $0x1e8] sm:$0xff]
        %v323 = vld [vmem:[#allocation5 + $0x1f0] sm:$0xff]
        %v324 = vld [vmem:[#allocation5 + $0x1f8] sm:$0xff]
        %v325 = vld [vmem:[#allocation5 + $0x200] sm:$0xff]
        %v326 = vld [vmem:[#allocation5 + $0x208] sm:$0xff]
        %v327 = vld [vmem:[#allocation5 + $0x210] sm:$0xff]
        %v328 = vld [vmem:[#allocation5 + $0x218] sm:$0xff]
        %v329 = vld [vmem:[#allocation5 + $0x220] sm:$0xff]
        %v330 = vld [vmem:[#allocation5 + $0x228] sm:$0xff]
        %v331 = vld [vmem:[#allocation5 + $0x230] sm:$0xff]
        %v332 = vld [vmem:[#allocation5 + $0x238] sm:$0xff]
        %v333 = vld [vmem:[#allocation5 + $0x240] sm:$0xff]
        %v334 = vld [vmem:[#allocation5 + $0x248] sm:$0xff]
        %v335 = vld [vmem:[#allocation5 + $0x250] sm:$0xff]
        %v336 = vld [vmem:[#allocation5 + $0x258] sm:$0xff]
        %v337 = vld [vmem:[#allocation5 + $0x260] sm:$0xff]
        %v338 = vld [vmem:[#allocation5 + $0x268] sm:$0xff]
        %v339 = vld [vmem:[#allocation5 + $0x270] sm:$0xff]
        %v340 = vld [vmem:[#allocation5 + $0x278] sm:$0xff]
        %v341 = vld [vmem:[#allocation5 + $0x280] sm:$0xff]
        %v342 = vld [vmem:[#allocation5 + $0x288] sm:$0xff]
        %v343 = vld [vmem:[#allocation5 + $0x290] sm:$0xff]
        %v344 = vld [vmem:[#allocation5 + $0x298] sm:$0xff]
        %v345 = vld [vmem:[#allocation5 + $0x2a0] sm:$0xff]
        %v346 = vld [vmem:[#allocation5 + $0x2a8] sm:$0xff]
        %v347 = vld [vmem:[#allocation5 + $0x2b0] sm:$0xff]
        %v348 = vld [vmem:[#allocation5 + $0x2b8] sm:$0xff]
        %v349 = vld [vmem:[#allocation5 + $0x2c0] sm:$0xff]
        %v350 = vld [vmem:[#allocation5 + $0x2c8] sm:$0xff]
        %v351 = vld [vmem:[#allocation5 + $0x2d0] sm:$0xff]
        %v352 = vld [vmem:[#allocation5 + $0x2d8] sm:$0xff]
        %v353 = vld [vmem:[#allocation5 + $0x2e0] sm:$0xff]
        %v354 = vld [vmem:[#allocation5 + $0x2e8] sm:$0xff]
        %v355 = vld [vmem:[#allocation5 + $0x2f0] sm:$0xff]
        %v356 = vld [vmem:[#allocation5 + $0x2f8] sm:$0xff]
        %v357 = vld [vmem:[#allocation5 + $0x300] sm:$0xff]
        %v358 = vld [vmem:[#allocation5 + $0x308] sm:$0xff]
        %v359 = vld [vmem:[#allocation5 + $0x310] sm:$0xff]
        %v360 = vld [vmem:[#allocation5 + $0x318] sm:$0xff]
        %v361 = vld [vmem:[#allocation5 + $0x320] sm:$0xff]
        %v362 = vld [vmem:[#allocation5 + $0x328] sm:$0xff]
        %v363 = vld [vmem:[#allocation5 + $0x330] sm:$0xff]
        %v364 = vld [vmem:[#allocation5 + $0x338] sm:$0xff]
        %v365 = vld [vmem:[#allocation5 + $0x340] sm:$0xff]
        %v366 = vld [vmem:[#allocation5 + $0x348] sm:$0xff]
        %v367 = vld [vmem:[#allocation5 + $0x350] sm:$0xff]
        %v368 = vld [vmem:[#allocation5 + $0x358] sm:$0xff]
        %v369 = vld [vmem:[#allocation5 + $0x360] sm:$0xff]
        %v370 = vld [vmem:[#allocation5 + $0x368] sm:$0xff]
        %v371 = vld [vmem:[#allocation5 + $0x370] sm:$0xff]
        %v372 = vld [vmem:[#allocation5 + $0x378] sm:$0xff]
        %v373 = vld [vmem:[#allocation5 + $0x380] sm:$0xff]
        %v374 = vld [vmem:[#allocation5 + $0x388] sm:$0xff]
        %v375 = vld [vmem:[#allocation5 + $0x390] sm:$0xff]
        %v376 = vld [vmem:[#allocation5 + $0x398] sm:$0xff]
        %v377 = vld [vmem:[#allocation5 + $0x3a0] sm:$0xff]
        %v378 = vld [vmem:[#allocation5 + $0x3a8] sm:$0xff]
        %v379 = vld [vmem:[#allocation5 + $0x3b0] sm:$0xff]
        %v380 = vld [vmem:[#allocation5 + $0x3b8] sm:$0xff]
        %v381 = vld [vmem:[#allocation5 + $0x3c0] sm:$0xff]
        %v382 = vld [vmem:[#allocation5 + $0x3c8] sm:$0xff]
        %v383 = vld [vmem:[#allocation5 + $0x3d0] sm:$0xff]
        %v384 = vld [vmem:[#allocation5 + $0x3d8] sm:$0xff]
        %v385 = vld [vmem:[#allocation5 + $0x3e0] sm:$0xff]
        %v386 = vld [vmem:[#allocation5 + $0x3e8] sm:$0xff]
        %v387 = vld [vmem:[#allocation5 + $0x3f0] sm:$0xff]
        %v388 = vld [vmem:[#allocation5 + $0x3f8] sm:$0xff]
        %v389 = vld [vmem:[#allocation5 + $0x400] sm:$0xff]
        %v390 = vld [vmem:[#allocation5 + $0x408] sm:$0xff]
        %v391 = vld [vmem:[#allocation5 + $0x410] sm:$0xff]
        %v392 = vld [vmem:[#allocation5 + $0x418] sm:$0xff]
        %v393 = vld [vmem:[#allocation5 + $0x420] sm:$0xff]
        %v394 = vld [vmem:[#allocation5 + $0x428] sm:$0xff]
        %v395 = vld [vmem:[#allocation5 + $0x430] sm:$0xff]
        %v396 = vld [vmem:[#allocation5 + $0x438] sm:$0xff]
        %v397 = vld [vmem:[#allocation5 + $0x440] sm:$0xff]
        %v398 = vld [vmem:[#allocation5 + $0x448] sm:$0xff]
        %v399 = vld [vmem:[#allocation5 + $0x450] sm:$0xff]
        %v400 = vld [vmem:[#allocation5 + $0x458] sm:$0xff]
        %v401 = vld [vmem:[#allocation5 + $0x460] sm:$0xff]
        %v402 = vld [vmem:[#allocation5 + $0x468] sm:$0xff]
        %v403 = vld [vmem:[#allocation5 + $0x470] sm:$0xff]
        %v404 = vld [vmem:[#allocation5 + $0x478] sm:$0xff]
        %v405 = vld [vmem:[#allocation5 + $0x480] sm:$0xff]
        %v406 = vld [vmem:[#allocation5 + $0x488] sm:$0xff]
        %v407 = vld [vmem:[#allocation5 + $0x490] sm:$0xff]
        %v408 = vld [vmem:[#allocation5 + $0x498] sm:$0xff]
        %v409 = vld [vmem:[#allocation5 + $0x4a0] sm:$0xff]
        %v410 = vld [vmem:[#allocation5 + $0x4a8] sm:$0xff]
        %v411 = vld [vmem:[#allocation5 + $0x4b0] sm:$0xff]
        %v412 = vld [vmem:[#allocation5 + $0x4b8] sm:$0xff]
        %v413 = vld [vmem:[#allocation5 + $0x4c0] sm:$0xff]
        %v414 = vld [vmem:[#allocation5 + $0x4c8] sm:$0xff]
        %v415 = vld [vmem:[#allocation5 + $0x4d0] sm:$0xff]
        %v416 = vld [vmem:[#allocation5 + $0x4d8] sm:$0xff]
        %v417 = vld [vmem:[#allocation5 + $0x4e0] sm:$0xff]
        %v418 = vld [vmem:[#allocation5 + $0x4e8] sm:$0xff]
        %v419 = vld [vmem:[#allocation5 + $0x4f0] sm:$0xff]
        %v420 = vld [vmem:[#allocation5 + $0x4f8] sm:$0xff]
        %v421 = vld [vmem:[#allocation5 + $0x500] sm:$0xff]
        %v422 = vld [vmem:[#allocation5 + $0x508] sm:$0xff]
        %v423 = vld [vmem:[#allocation5 + $0x510] sm:$0xff]
        %v424 = vld [vmem:[#allocation5 + $0x518] sm:$0xff]
        %v425 = vld [vmem:[#allocation5 + $0x520] sm:$0xff]
        %v426 = vld [vmem:[#allocation5 + $0x528] sm:$0xff]
        %v427 = vld [vmem:[#allocation5 + $0x530] sm:$0xff]
        %v428 = vld [vmem:[#allocation5 + $0x538] sm:$0xff]
        %v429 = vld [vmem:[#allocation5 + $0x540] sm:$0xff]
        %v430 = vld [vmem:[#allocation5 + $0x548] sm:$0xff]
        %v431 = vld [vmem:[#allocation5 + $0x550] sm:$0xff]
        %v432 = vld [vmem:[#allocation5 + $0x558] sm:$0xff]
        %v433 = vld [vmem:[#allocation5 + $0x560] sm:$0xff]
        %v434 = vld [vmem:[#allocation5 + $0x568] sm:$0xff]
        %v435 = vld [vmem:[#allocation5 + $0x570] sm:$0xff]
        %v436 = vld [vmem:[#allocation5 + $0x578] sm:$0xff]
        %v437 = vld [vmem:[#allocation5 + $0x580] sm:$0xff]
        %v438 = vld [vmem:[#allocation5 + $0x588] sm:$0xff]
        %v439 = vld [vmem:[#allocation5 + $0x590] sm:$0xff]
        %v440 = vld [vmem:[#allocation5 + $0x598] sm:$0xff]
        %v441 = vld [vmem:[#allocation5 + $0x5a0] sm:$0xff]
        %v442 = vld [vmem:[#allocation5 + $0x5a8] sm:$0xff]
        %v443 = vld [vmem:[#allocation5 + $0x5b0] sm:$0xff]
        %v444 = vld [vmem:[#allocation5 + $0x5b8] sm:$0xff]
        %v445 = vld [vmem:[#allocation5 + $0x5c0] sm:$0xff]
        %v446 = vld [vmem:[#allocation5 + $0x5c8] sm:$0xff]
        %v447 = vld [vmem:[#allocation5 + $0x5d0] sm:$0xff]
        %v448 = vld [vmem:[#allocation5 + $0x5d8] sm:$0xff]
        %v449 = vld [vmem:[#allocation5 + $0x5e0] sm:$0xff]
        %v450 = vld [vmem:[#allocation5 + $0x5e8] sm:$0xff]
        %v451 = vld [vmem:[#allocation5 + $0x5f0] sm:$0xff]
        %v452 = vld [vmem:[#allocation5 + $0x5f8] sm:$0xff]
        %v453 = vld [vmem:[#allocation5 + $0x600] sm:$0xff]
        %v454 = vld [vmem:[#allocation5 + $0x608] sm:$0xff]
        %v455 = vld [vmem:[#allocation5 + $0x610] sm:$0xff]
        %v456 = vld [vmem:[#allocation5 + $0x618] sm:$0xff]
        %v457 = vld [vmem:[#allocation5 + $0x620] sm:$0xff]
        %v458 = vld [vmem:[#allocation5 + $0x628] sm:$0xff]
        %v459 = vld [vmem:[#allocation5 + $0x630] sm:$0xff]
        %v460 = vld [vmem:[#allocation5 + $0x638] sm:$0xff]
        %v461 = vld [vmem:[#allocation5 + $0x640] sm:$0xff]
        %v462 = vld [vmem:[#allocation5 + $0x648] sm:$0xff]
        %v463 = vld [vmem:[#allocation5 + $0x650] sm:$0xff]
        %v464 = vld [vmem:[#allocation5 + $0x658] sm:$0xff]
        %v465 = vld [vmem:[#allocation5 + $0x660] sm:$0xff]
        %v466 = vld [vmem:[#allocation5 + $0x668] sm:$0xff]
        %v467 = vld [vmem:[#allocation5 + $0x670] sm:$0xff]
        %v468 = vld [vmem:[#allocation5 + $0x678] sm:$0xff]
        %v469 = vld [vmem:[#allocation5 + $0x680] sm:$0xff]
        %v470 = vld [vmem:[#allocation5 + $0x688] sm:$0xff]
        %v471 = vld [vmem:[#allocation5 + $0x690] sm:$0xff]
        %v472 = vld [vmem:[#allocation5 + $0x698] sm:$0xff]
        %v473 = vld [vmem:[#allocation5 + $0x6a0] sm:$0xff]
        %v474 = vld [vmem:[#allocation5 + $0x6a8] sm:$0xff]
        %v475 = vld [vmem:[#allocation5 + $0x6b0] sm:$0xff]
        %v476 = vld [vmem:[#allocation5 + $0x6b8] sm:$0xff]
        %v477 = vld [vmem:[#allocation5 + $0x6c0] sm:$0xff]
        %v478 = vld [vmem:[#allocation5 + $0x6c8] sm:$0xff]
        %v479 = vld [vmem:[#allocation5 + $0x6d0] sm:$0xff]
        %v480 = vld [vmem:[#allocation5 + $0x6d8] sm:$0xff]
        %v481 = vld [vmem:[#allocation5 + $0x6e0] sm:$0xff]
        %v482 = vld [vmem:[#allocation5 + $0x6e8] sm:$0xff]
        %v483 = vld [vmem:[#allocation5 + $0x6f0] sm:$0xff]
        %v484 = vld [vmem:[#allocation5 + $0x6f8] sm:$0xff]
        %v485 = vld [vmem:[#allocation5 + $0x700] sm:$0xff]
        %v486 = vld [vmem:[#allocation5 + $0x708] sm:$0xff]
        %v487 = vld [vmem:[#allocation5 + $0x710] sm:$0xff]
        %v488 = vld [vmem:[#allocation5 + $0x718] sm:$0xff]
        %v489 = vld [vmem:[#allocation5 + $0x720] sm:$0xff]
        %v490 = vld [vmem:[#allocation5 + $0x728] sm:$0xff]
        %v491 = vld [vmem:[#allocation5 + $0x730] sm:$0xff]
        %v492 = vld [vmem:[#allocation5 + $0x738] sm:$0xff]
        %v493 = vld [vmem:[#allocation5 + $0x740] sm:$0xff]
        %v494 = vld [vmem:[#allocation5 + $0x748] sm:$0xff]
        %v495 = vld [vmem:[#allocation5 + $0x750] sm:$0xff]
        %v496 = vld [vmem:[#allocation5 + $0x758] sm:$0xff]
        %v497 = vld [vmem:[#allocation5 + $0x760] sm:$0xff]
        %v498 = vld [vmem:[#allocation5 + $0x768] sm:$0xff]
        %v499 = vld [vmem:[#allocation5 + $0x770] sm:$0xff]
        %v500 = vld [vmem:[#allocation5 + $0x778] sm:$0xff]
        %501 = vmatpush.msra.mxu0 %v306
        %502 = vmatpush.msra.mxu0 %v303
        %503 = vmatpush.msra.mxu0 %v300
        %504 = vmatpush.msra.mxu0 %v297
        %505 = vmatpush.msra.mxu0 %v294
        %506 = vmatpush.msra.mxu0 %v291
        %507 = vmatpush.msra.mxu0 %v288
        %508 = vmatpush.msra.mxu0 %v285
        %509 = vmatpush.msra.mxu0 %v282
        %510 = vmatpush.msra.mxu0 %v279
        %511 = vmatpush.msra.mxu0 %v276
        %512 = vmatpush.msra.mxu0 %v273
        %513 = vmatpush.msra.mxu0 %v270
        %514 = vmatpush.msra.mxu0 %v267
        %515 = vmatpush.msra.mxu0 %v264
        %516 = vmatpush.msra.mxu0 %v261
        %517 = vmatmul.f32.gmra.mxu0 %v181
        %v518 = vpop.f32.mrf.mxu0
        %v519 = vadd.f32 0.0, %v518
        %520 = vmatmul.f32.gmra.mxu0 %v186
        %v521 = vpop.f32.mrf.mxu0
        %v522 = vadd.f32 0.0, %v521
        %523 = vmatmul.f32.gmra.mxu0 %v191
        %v524 = vpop.f32.mrf.mxu0
        %v525 = vadd.f32 0.0, %v524
        %526 = vmatmul.f32.gmra.mxu0 %v196
        %v527 = vpop.f32.mrf.mxu0
        %v528 = vadd.f32 0.0, %v527
        %529 = vmatmul.f32.gmra.mxu0 %v201
        %v530 = vpop.f32.mrf.mxu0
        %v531 = vadd.f32 0.0, %v530
        %532 = vmatmul.f32.gmra.mxu0 %v206
        %v533 = vpop.f32.mrf.mxu0
        %v534 = vadd.f32 0.0, %v533
        %535 = vmatmul.f32.gmra.mxu0 %v211
        %v536 = vpop.f32.mrf.mxu0
        %v537 = vadd.f32 0.0, %v536
        %538 = vmatmul.f32.gmra.mxu0 %v216
        %v539 = vpop.f32.mrf.mxu0
        %v540 = vadd.f32 0.0, %v539
        %541 = vmatmul.f32.gmra.mxu0 %v221
        %v542 = vpop.f32.mrf.mxu0
        %v543 = vadd.f32 0.0, %v542
        %544 = vmatmul.f32.gmra.mxu0 %v226
        %v545 = vpop.f32.mrf.mxu0
        %v546 = vadd.f32 0.0, %v545
        %547 = vmatmul.f32.gmra.mxu0 %v231
        %v548 = vpop.f32.mrf.mxu0
        %v549 = vadd.f32 0.0, %v548
        %550 = vmatmul.f32.gmra.mxu0 %v236
        %v551 = vpop.f32.mrf.mxu0
        %v552 = vadd.f32 0.0, %v551
        %553 = vmatmul.f32.gmra.mxu0 %v241
        %v554 = vpop.f32.mrf.mxu0
        %v555 = vadd.f32 0.0, %v554
        %556 = vmatmul.f32.gmra.mxu0 %v246
        %v557 = vpop.f32.mrf.mxu0
        %v558 = vadd.f32 0.0, %v557
        %559 = vmatmul.f32.gmra.mxu0 %v251
        %v560 = vpop.f32.mrf.mxu0
        %v561 = vadd.f32 0.0, %v560
        %562 = vmatmul.f32.gmra.mxu0 %v256
        %v563 = vpop.f32.mrf.mxu0
        %v564 = vadd.f32 0.0, %v563
        %565 = vdwg.mxu0
        %566 = vmatpush.msra.mxu0 %v354
        %567 = vmatpush.msra.mxu0 %v351
        %568 = vmatpush.msra.mxu0 %v348
        %569 = vmatpush.msra.mxu0 %v345
        %570 = vmatpush.msra.mxu0 %v342
        %571 = vmatpush.msra.mxu0 %v339
        %572 = vmatpush.msra.mxu0 %v336
        %573 = vmatpush.msra.mxu0 %v333
        %574 = vmatpush.msra.mxu0 %v330
        %575 = vmatpush.msra.mxu0 %v327
        %576 = vmatpush.msra.mxu0 %v324
        %577 = vmatpush.msra.mxu0 %v321
        %578 = vmatpush.msra.mxu0 %v318
        %579 = vmatpush.msra.mxu0 %v315
        %580 = vmatpush.msra.mxu0 %v312
        %581 = vmatpush.msra.mxu0 %v309
        %582 = vmatmul.f32.gmra.mxu0 %v182
        %v583 = vpop.f32.mrf.mxu0
        %v584 = vadd.f32 %v519, %v583
        %585 = vmatmul.f32.gmra.mxu0 %v187
        %v586 = vpop.f32.mrf.mxu0
        %v587 = vadd.f32 %v522, %v586
        %588 = vmatmul.f32.gmra.mxu0 %v192
        %v589 = vpop.f32.mrf.mxu0
        %v590 = vadd.f32 %v525, %v589
        %591 = vmatmul.f32.gmra.mxu0 %v197
        %v592 = vpop.f32.mrf.mxu0
        %v593 = vadd.f32 %v528, %v592
        %594 = vmatmul.f32.gmra.mxu0 %v202
        %v595 = vpop.f32.mrf.mxu0
        %v596 = vadd.f32 %v531, %v595
        %597 = vmatmul.f32.gmra.mxu0 %v207
        %v598 = vpop.f32.mrf.mxu0
        %v599 = vadd.f32 %v534, %v598
        %600 = vmatmul.f32.gmra.mxu0 %v212
        %v601 = vpop.f32.mrf.mxu0
        %v602 = vadd.f32 %v537, %v601
        %603 = vmatmul.f32.gmra.mxu0 %v217
        %v604 = vpop.f32.mrf.mxu0
        %v605 = vadd.f32 %v540, %v604
        %606 = vmatmul.f32.gmra.mxu0 %v222
        %v607 = vpop.f32.mrf.mxu0
        %v608 = vadd.f32 %v543, %v607
        %609 = vmatmul.f32.gmra.mxu0 %v227
        %v610 = vpop.f32.mrf.mxu0
        %v611 = vadd.f32 %v546, %v610
        %612 = vmatmul.f32.gmra.mxu0 %v232
        %v613 = vpop.f32.mrf.mxu0
        %v614 = vadd.f32 %v549, %v613
        %615 = vmatmul.f32.gmra.mxu0 %v237
        %v616 = vpop.f32.mrf.mxu0
        %v617 = vadd.f32 %v552, %v616
        %618 = vmatmul.f32.gmra.mxu0 %v242
        %v619 = vpop.f32.mrf.mxu0
        %v620 = vadd.f32 %v555, %v619
        %621 = vmatmul.f32.gmra.mxu0 %v247
        %v622 = vpop.f32.mrf.mxu0
        %v623 = vadd.f32 %v558, %v622
        %624 = vmatmul.f32.gmra.mxu0 %v252
        %v625 = vpop.f32.mrf.mxu0
        %v626 = vadd.f32 %v561, %v625
        %627 = vmatmul.f32.gmra.mxu0 %v257
        %v628 = vpop.f32.mrf.mxu0
        %v629 = vadd.f32 %v564, %v628
        %630 = vdwg.mxu0
        %631 = vmatpush.msra.mxu0 %v402
        %632 = vmatpush.msra.mxu0 %v399
        %633 = vmatpush.msra.mxu0 %v396
        %634 = vmatpush.msra.mxu0 %v393
        %635 = vmatpush.msra.mxu0 %v390
        %636 = vmatpush.msra.mxu0 %v387
        %637 = vmatpush.msra.mxu0 %v384
        %638 = vmatpush.msra.mxu0 %v381
        %639 = vmatpush.msra.mxu0 %v378
        %640 = vmatpush.msra.mxu0 %v375
        %641 = vmatpush.msra.mxu0 %v372
        %642 = vmatpush.msra.mxu0 %v369
        %643 = vmatpush.msra.mxu0 %v366
        %644 = vmatpush.msra.mxu0 %v363
        %645 = vmatpush.msra.mxu0 %v360
        %646 = vmatpush.msra.mxu0 %v357
        %647 = vmatmul.f32.gmra.mxu0 %v183
        %v648 = vpop.f32.mrf.mxu0
        %v649 = vadd.f32 %v584, %v648
        %650 = vmatmul.f32.gmra.mxu0 %v188
        %v651 = vpop.f32.mrf.mxu0
        %v652 = vadd.f32 %v587, %v651
        %653 = vmatmul.f32.gmra.mxu0 %v193
        %v654 = vpop.f32.mrf.mxu0
        %v655 = vadd.f32 %v590, %v654
        %656 = vmatmul.f32.gmra.mxu0 %v198
        %v657 = vpop.f32.mrf.mxu0
        %v658 = vadd.f32 %v593, %v657
        %659 = vmatmul.f32.gmra.mxu0 %v203
        %v660 = vpop.f32.mrf.mxu0
        %v661 = vadd.f32 %v596, %v660
        %662 = vmatmul.f32.gmra.mxu0 %v208
        %v663 = vpop.f32.mrf.mxu0
        %v664 = vadd.f32 %v599, %v663
        %665 = vmatmul.f32.gmra.mxu0 %v213
        %v666 = vpop.f32.mrf.mxu0
        %v667 = vadd.f32 %v602, %v666
        %668 = vmatmul.f32.gmra.mxu0 %v218
        %v669 = vpop.f32.mrf.mxu0
        %v670 = vadd.f32 %v605, %v669
        %671 = vmatmul.f32.gmra.mxu0 %v223
        %v672 = vpop.f32.mrf.mxu0
        %v673 = vadd.f32 %v608, %v672
        %674 = vmatmul.f32.gmra.mxu0 %v228
        %v675 = vpop.f32.mrf.mxu0
        %v676 = vadd.f32 %v611, %v675
        %677 = vmatmul.f32.gmra.mxu0 %v233
        %v678 = vpop.f32.mrf.mxu0
        %v679 = vadd.f32 %v614, %v678
        %680 = vmatmul.f32.gmra.mxu0 %v238
        %v681 = vpop.f32.mrf.mxu0
        %v682 = vadd.f32 %v617, %v681
        %683 = vmatmul.f32.gmra.mxu0 %v243
        %v684 = vpop.f32.mrf.mxu0
        %v685 = vadd.f32 %v620, %v684
        %686 = vmatmul.f32.gmra.mxu0 %v248
        %v687 = vpop.f32.mrf.mxu0
        %v688 = vadd.f32 %v623, %v687
        %689 = vmatmul.f32.gmra.mxu0 %v253
        %v690 = vpop.f32.mrf.mxu0
        %v691 = vadd.f32 %v626, %v690
        %692 = vmatmul.f32.gmra.mxu0 %v258
        %v693 = vpop.f32.mrf.mxu0
        %v694 = vadd.f32 %v629, %v693
        %695 = vdwg.mxu0
        %696 = vmatpush.msra.mxu0 %v450
        %697 = vmatpush.msra.mxu0 %v447
        %698 = vmatpush.msra.mxu0 %v444
        %699 = vmatpush.msra.mxu0 %v441
        %700 = vmatpush.msra.mxu0 %v438
        %701 = vmatpush.msra.mxu0 %v435
        %702 = vmatpush.msra.mxu0 %v432
        %703 = vmatpush.msra.mxu0 %v429
        %704 = vmatpush.msra.mxu0 %v426
        %705 = vmatpush.msra.mxu0 %v423
        %706 = vmatpush.msra.mxu0 %v420
        %707 = vmatpush.msra.mxu0 %v417
        %708 = vmatpush.msra.mxu0 %v414
        %709 = vmatpush.msra.mxu0 %v411
        %710 = vmatpush.msra.mxu0 %v408
        %711 = vmatpush.msra.mxu0 %v405
        %712 = vmatmul.f32.gmra.mxu0 %v184
        %v713 = vpop.f32.mrf.mxu0
        %v714 = vadd.f32 %v649, %v713
        %715 = vmatmul.f32.gmra.mxu0 %v189
        %v716 = vpop.f32.mrf.mxu0
        %v717 = vadd.f32 %v652, %v716
        %718 = vmatmul.f32.gmra.mxu0 %v194
        %v719 = vpop.f32.mrf.mxu0
        %v720 = vadd.f32 %v655, %v719
        %721 = vmatmul.f32.gmra.mxu0 %v199
        %v722 = vpop.f32.mrf.mxu0
        %v723 = vadd.f32 %v658, %v722
        %724 = vmatmul.f32.gmra.mxu0 %v204
        %v725 = vpop.f32.mrf.mxu0
        %v726 = vadd.f32 %v661, %v725
        %727 = vmatmul.f32.gmra.mxu0 %v209
        %v728 = vpop.f32.mrf.mxu0
        %v729 = vadd.f32 %v664, %v728
        %730 = vmatmul.f32.gmra.mxu0 %v214
        %v731 = vpop.f32.mrf.mxu0
        %v732 = vadd.f32 %v667, %v731
        %733 = vmatmul.f32.gmra.mxu0 %v219
        %v734 = vpop.f32.mrf.mxu0
        %v735 = vadd.f32 %v670, %v734
        %736 = vmatmul.f32.gmra.mxu0 %v224
        %v737 = vpop.f32.mrf.mxu0
        %v738 = vadd.f32 %v673, %v737
        %739 = vmatmul.f32.gmra.mxu0 %v229
        %v740 = vpop.f32.mrf.mxu0
        %v741 = vadd.f32 %v676, %v740
        %742 = vmatmul.f32.gmra.mxu0 %v234
        %v743 = vpop.f32.mrf.mxu0
        %v744 = vadd.f32 %v679, %v743
        %745 = vmatmul.f32.gmra.mxu0 %v239
        %v746 = vpop.f32.mrf.mxu0
        %v747 = vadd.f32 %v682, %v746
        %748 = vmatmul.f32.gmra.mxu0 %v244
        %v749 = vpop.f32.mrf.mxu0
        %v750 = vadd.f32 %v685, %v749
        %751 = vmatmul.f32.gmra.mxu0 %v249
        %v752 = vpop.f32.mrf.mxu0
        %v753 = vadd.f32 %v688, %v752
        %754 = vmatmul.f32.gmra.mxu0 %v254
        %v755 = vpop.f32.mrf.mxu0
        %v756 = vadd.f32 %v691, %v755
        %757 = vmatmul.f32.gmra.mxu0 %v259
        %v758 = vpop.f32.mrf.mxu0
        %v759 = vadd.f32 %v694, %v758
        %760 = vdwg.mxu0
        %761 = vmatpush.msra.mxu0 %v498
        %762 = vmatpush.msra.mxu0 %v495
        %763 = vmatpush.msra.mxu0 %v492
        %764 = vmatpush.msra.mxu0 %v489
        %765 = vmatpush.msra.mxu0 %v486
        %766 = vmatpush.msra.mxu0 %v483
        %767 = vmatpush.msra.mxu0 %v480
        %768 = vmatpush.msra.mxu0 %v477
        %769 = vmatpush.msra.mxu0 %v474
        %770 = vmatpush.msra.mxu0 %v471
        %771 = vmatpush.msra.mxu0 %v468
        %772 = vmatpush.msra.mxu0 %v465
        %773 = vmatpush.msra.mxu0 %v462
        %774 = vmatpush.msra.mxu0 %v459
        %775 = vmatpush.msra.mxu0 %v456
        %776 = vmatpush.msra.mxu0 %v453
        %777 = vmatmul.f32.gmra.mxu0 %v185
        %v778 = vpop.f32.mrf.mxu0
        %v779 = vadd.f32 %v714, %v778
        %780 = vmatmul.f32.gmra.mxu0 %v190
        %v781 = vpop.f32.mrf.mxu0
        %v782 = vadd.f32 %v717, %v781
        %783 = vmatmul.f32.gmra.mxu0 %v195
        %v784 = vpop.f32.mrf.mxu0
        %v785 = vadd.f32 %v720, %v784
        %786 = vmatmul.f32.gmra.mxu0 %v200
        %v787 = vpop.f32.mrf.mxu0
        %v788 = vadd.f32 %v723, %v787
        %789 = vmatmul.f32.gmra.mxu0 %v205
        %v790 = vpop.f32.mrf.mxu0
        %v791 = vadd.f32 %v726, %v790
        %792 = vmatmul.f32.gmra.mxu0 %v210
        %v793 = vpop.f32.mrf.mxu0
        %v794 = vadd.f32 %v729, %v793
        %795 = vmatmul.f32.gmra.mxu0 %v215
        %v796 = vpop.f32.mrf.mxu0
        %v797 = vadd.f32 %v732, %v796
        %798 = vmatmul.f32.gmra.mxu0 %v220
        %v799 = vpop.f32.mrf.mxu0
        %v800 = vadd.f32 %v735, %v799
        %801 = vmatmul.f32.gmra.mxu0 %v225
        %v802 = vpop.f32.mrf.mxu0
        %v803 = vadd.f32 %v738, %v802
        %804 = vmatmul.f32.gmra.mxu0 %v230
        %v805 = vpop.f32.mrf.mxu0
        %v806 = vadd.f32 %v741, %v805
        %807 = vmatmul.f32.gmra.mxu0 %v235
        %v808 = vpop.f32.mrf.mxu0
        %v809 = vadd.f32 %v744, %v808
        %810 = vmatmul.f32.gmra.mxu0 %v240
        %v811 = vpop.f32.mrf.mxu0
        %v812 = vadd.f32 %v747, %v811
        %813 = vmatmul.f32.gmra.mxu0 %v245
        %v814 = vpop.f32.mrf.mxu0
        %v815 = vadd.f32 %v750, %v814
        %816 = vmatmul.f32.gmra.mxu0 %v250
        %v817 = vpop.f32.mrf.mxu0
        %v818 = vadd.f32 %v753, %v817
        %819 = vmatmul.f32.gmra.mxu0 %v255
        %v820 = vpop.f32.mrf.mxu0
        %v821 = vadd.f32 %v756, %v820
        %822 = vmatmul.f32.gmra.mxu0 %v260
        %v823 = vpop.f32.mrf.mxu0
        %v824 = vadd.f32 %v759, %v823
        %825 = vdwg.mxu0
        %826 = vmatpush.msra.mxu0 %v307
        %827 = vmatpush.msra.mxu0 %v304
        %828 = vmatpush.msra.mxu0 %v301
        %829 = vmatpush.msra.mxu0 %v298
        %830 = vmatpush.msra.mxu0 %v295
        %831 = vmatpush.msra.mxu0 %v292
        %832 = vmatpush.msra.mxu0 %v289
        %833 = vmatpush.msra.mxu0 %v286
        %834 = vmatpush.msra.mxu0 %v283
        %835 = vmatpush.msra.mxu0 %v280
        %836 = vmatpush.msra.mxu0 %v277
        %837 = vmatpush.msra.mxu0 %v274
        %838 = vmatpush.msra.mxu0 %v271
        %839 = vmatpush.msra.mxu0 %v268
        %840 = vmatpush.msra.mxu0 %v265
        %841 = vmatpush.msra.mxu0 %v262
        %842 = vmatmul.f32.gmra.mxu0 %v181
        %v843 = vpop.f32.mrf.mxu0
        %v844 = vadd.f32 0.0, %v843
        %845 = vmatmul.f32.gmra.mxu0 %v186
        %v846 = vpop.f32.mrf.mxu0
        %v847 = vadd.f32 0.0, %v846
        %848 = vmatmul.f32.gmra.mxu0 %v191
        %v849 = vpop.f32.mrf.mxu0
        %v850 = vadd.f32 0.0, %v849
        %851 = vmatmul.f32.gmra.mxu0 %v196
        %v852 = vpop.f32.mrf.mxu0
        %v853 = vadd.f32 0.0, %v852
        %854 = vmatmul.f32.gmra.mxu0 %v201
        %v855 = vpop.f32.mrf.mxu0
        %v856 = vadd.f32 0.0, %v855
        %857 = vmatmul.f32.gmra.mxu0 %v206
        %v858 = vpop.f32.mrf.mxu0
        %v859 = vadd.f32 0.0, %v858
        %860 = vmatmul.f32.gmra.mxu0 %v211
        %v861 = vpop.f32.mrf.mxu0
        %v862 = vadd.f32 0.0, %v861
        %863 = vmatmul.f32.gmra.mxu0 %v216
        %v864 = vpop.f32.mrf.mxu0
        %v865 = vadd.f32 0.0, %v864
        %866 = vmatmul.f32.gmra.mxu0 %v221
        %v867 = vpop.f32.mrf.mxu0
        %v868 = vadd.f32 0.0, %v867
        %869 = vmatmul.f32.gmra.mxu0 %v226
        %v870 = vpop.f32.mrf.mxu0
        %v871 = vadd.f32 0.0, %v870
        %872 = vmatmul.f32.gmra.mxu0 %v231
        %v873 = vpop.f32.mrf.mxu0
        %v874 = vadd.f32 0.0, %v873
        %875 = vmatmul.f32.gmra.mxu0 %v236
        %v876 = vpop.f32.mrf.mxu0
        %v877 = vadd.f32 0.0, %v876
        %878 = vmatmul.f32.gmra.mxu0 %v241
        %v879 = vpop.f32.mrf.mxu0
        %v880 = vadd.f32 0.0, %v879
        %881 = vmatmul.f32.gmra.mxu0 %v246
        %v882 = vpop.f32.mrf.mxu0
        %v883 = vadd.f32 0.0, %v882
        %884 = vmatmul.f32.gmra.mxu0 %v251
        %v885 = vpop.f32.mrf.mxu0
        %v886 = vadd.f32 0.0, %v885
        %887 = vmatmul.f32.gmra.mxu0 %v256
        %v888 = vpop.f32.mrf.mxu0
        %v889 = vadd.f32 0.0, %v888
        %890 = vdwg.mxu0
        %891 = vmatpush.msra.mxu0 %v355
        %892 = vmatpush.msra.mxu0 %v352
        %893 = vmatpush.msra.mxu0 %v349
        %894 = vmatpush.msra.mxu0 %v346
        %895 = vmatpush.msra.mxu0 %v343
        %896 = vmatpush.msra.mxu0 %v340
        %897 = vmatpush.msra.mxu0 %v337
        %898 = vmatpush.msra.mxu0 %v334
        %899 = vmatpush.msra.mxu0 %v331
        %900 = vmatpush.msra.mxu0 %v328
        %901 = vmatpush.msra.mxu0 %v325
        %902 = vmatpush.msra.mxu0 %v322
        %903 = vmatpush.msra.mxu0 %v319
        %904 = vmatpush.msra.mxu0 %v316
        %905 = vmatpush.msra.mxu0 %v313
        %906 = vmatpush.msra.mxu0 %v310
        %907 = vmatmul.f32.gmra.mxu0 %v182
        %v908 = vpop.f32.mrf.mxu0
        %v909 = vadd.f32 %v844, %v908
        %910 = vmatmul.f32.gmra.mxu0 %v187
        %v911 = vpop.f32.mrf.mxu0
        %v912 = vadd.f32 %v847, %v911
        %913 = vmatmul.f32.gmra.mxu0 %v192
        %v914 = vpop.f32.mrf.mxu0
        %v915 = vadd.f32 %v850, %v914
        %916 = vmatmul.f32.gmra.mxu0 %v197
        %v917 = vpop.f32.mrf.mxu0
        %v918 = vadd.f32 %v853, %v917
        %919 = vmatmul.f32.gmra.mxu0 %v202
        %v920 = vpop.f32.mrf.mxu0
        %v921 = vadd.f32 %v856, %v920
        %922 = vmatmul.f32.gmra.mxu0 %v207
        %v923 = vpop.f32.mrf.mxu0
        %v924 = vadd.f32 %v859, %v923
        %925 = vmatmul.f32.gmra.mxu0 %v212
        %v926 = vpop.f32.mrf.mxu0
        %v927 = vadd.f32 %v862, %v926
        %928 = vmatmul.f32.gmra.mxu0 %v217
        %v929 = vpop.f32.mrf.mxu0
        %v930 = vadd.f32 %v865, %v929
        %931 = vmatmul.f32.gmra.mxu0 %v222
        %v932 = vpop.f32.mrf.mxu0
        %v933 = vadd.f32 %v868, %v932
        %934 = vmatmul.f32.gmra.mxu0 %v227
        %v935 = vpop.f32.mrf.mxu0
        %v936 = vadd.f32 %v871, %v935
        %937 = vmatmul.f32.gmra.mxu0 %v232
        %v938 = vpop.f32.mrf.mxu0
        %v939 = vadd.f32 %v874, %v938
        %940 = vmatmul.f32.gmra.mxu0 %v237
        %v941 = vpop.f32.mrf.mxu0
        %v942 = vadd.f32 %v877, %v941
        %943 = vmatmul.f32.gmra.mxu0 %v242
        %v944 = vpop.f32.mrf.mxu0
        %v945 = vadd.f32 %v880, %v944
        %946 = vmatmul.f32.gmra.mxu0 %v247
        %v947 = vpop.f32.mrf.mxu0
        %v948 = vadd.f32 %v883, %v947
        %949 = vmatmul.f32.gmra.mxu0 %v252
        %v950 = vpop.f32.mrf.mxu0
        %v951 = vadd.f32 %v886, %v950
        %952 = vmatmul.f32.gmra.mxu0 %v257
        %v953 = vpop.f32.mrf.mxu0
        %v954 = vadd.f32 %v889, %v953
        %955 = vdwg.mxu0
        %956 = vmatpush.msra.mxu0 %v403
        %957 = vmatpush.msra.mxu0 %v400
        %958 = vmatpush.msra.mxu0 %v397
        %959 = vmatpush.msra.mxu0 %v394
        %960 = vmatpush.msra.mxu0 %v391
        %961 = vmatpush.msra.mxu0 %v388
        %962 = vmatpush.msra.mxu0 %v385
        %963 = vmatpush.msra.mxu0 %v382
        %964 = vmatpush.msra.mxu0 %v379
        %965 = vmatpush.msra.mxu0 %v376
        %966 = vmatpush.msra.mxu0 %v373
        %967 = vmatpush.msra.mxu0 %v370
        %968 = vmatpush.msra.mxu0 %v367
        %969 = vmatpush.msra.mxu0 %v364
        %970 = vmatpush.msra.mxu0 %v361
        %971 = vmatpush.msra.mxu0 %v358
        %972 = vmatmul.f32.gmra.mxu0 %v183
        %v973 = vpop.f32.mrf.mxu0
        %v974 = vadd.f32 %v909, %v973
        %975 = vmatmul.f32.gmra.mxu0 %v188
        %v976 = vpop.f32.mrf.mxu0
        %v977 = vadd.f32 %v912, %v976
        %978 = vmatmul.f32.gmra.mxu0 %v193
        %v979 = vpop.f32.mrf.mxu0
        %v980 = vadd.f32 %v915, %v979
        %981 = vmatmul.f32.gmra.mxu0 %v198
        %v982 = vpop.f32.mrf.mxu0
        %v983 = vadd.f32 %v918, %v982
        %984 = vmatmul.f32.gmra.mxu0 %v203
        %v985 = vpop.f32.mrf.mxu0
        %v986 = vadd.f32 %v921, %v985
        %987 = vmatmul.f32.gmra.mxu0 %v208
        %v988 = vpop.f32.mrf.mxu0
        %v989 = vadd.f32 %v924, %v988
        %990 = vmatmul.f32.gmra.mxu0 %v213
        %v991 = vpop.f32.mrf.mxu0
        %v992 = vadd.f32 %v927, %v991
        %993 = vmatmul.f32.gmra.mxu0 %v218
        %v994 = vpop.f32.mrf.mxu0
        %v995 = vadd.f32 %v930, %v994
        %996 = vmatmul.f32.gmra.mxu0 %v223
        %v997 = vpop.f32.mrf.mxu0
        %v998 = vadd.f32 %v933, %v997
        %999 = vmatmul.f32.gmra.mxu0 %v228
        %v1000 = vpop.f32.mrf.mxu0
        %v1001 = vadd.f32 %v936, %v1000
        %1002 = vmatmul.f32.gmra.mxu0 %v233
        %v1003 = vpop.f32.mrf.mxu0
        %v1004 = vadd.f32 %v939, %v1003
        %1005 = vmatmul.f32.gmra.mxu0 %v238
        %v1006 = vpop.f32.mrf.mxu0
        %v1007 = vadd.f32 %v942, %v1006
        %1008 = vmatmul.f32.gmra.mxu0 %v243
        %v1009 = vpop.f32.mrf.mxu0
        %v1010 = vadd.f32 %v945, %v1009
        %1011 = vmatmul.f32.gmra.mxu0 %v248
        %v1012 = vpop.f32.mrf.mxu0
        %v1013 = vadd.f32 %v948, %v1012
        %1014 = vmatmul.f32.gmra.mxu0 %v253
        %v1015 = vpop.f32.mrf.mxu0
        %v1016 = vadd.f32 %v951, %v1015
        %1017 = vmatmul.f32.gmra.mxu0 %v258
        %v1018 = vpop.f32.mrf.mxu0
        %v1019 = vadd.f32 %v954, %v1018
        %1020 = vdwg.mxu0
        %1021 = vmatpush.msra.mxu0 %v451
        %1022 = vmatpush.msra.mxu0 %v448
        %1023 = vmatpush.msra.mxu0 %v445
        %1024 = vmatpush.msra.mxu0 %v442
        %1025 = vmatpush.msra.mxu0 %v439
        %1026 = vmatpush.msra.mxu0 %v436
        %1027 = vmatpush.msra.mxu0 %v433
        %1028 = vmatpush.msra.mxu0 %v430
        %1029 = vmatpush.msra.mxu0 %v427
        %1030 = vmatpush.msra.mxu0 %v424
        %1031 = vmatpush.msra.mxu0 %v421
        %1032 = vmatpush.msra.mxu0 %v418
        %1033 = vmatpush.msra.mxu0 %v415
        %1034 = vmatpush.msra.mxu0 %v412
        %1035 = vmatpush.msra.mxu0 %v409
        %1036 = vmatpush.msra.mxu0 %v406
        %1037 = vmatmul.f32.gmra.mxu0 %v184
        %v1038 = vpop.f32.mrf.mxu0
        %v1039 = vadd.f32 %v974, %v1038
        %1040 = vmatmul.f32.gmra.mxu0 %v189
        %v1041 = vpop.f32.mrf.mxu0
        %v1042 = vadd.f32 %v977, %v1041
        %1043 = vmatmul.f32.gmra.mxu0 %v194
        %v1044 = vpop.f32.mrf.mxu0
        %v1045 = vadd.f32 %v980, %v1044
        %1046 = vmatmul.f32.gmra.mxu0 %v199
        %v1047 = vpop.f32.mrf.mxu0
        %v1048 = vadd.f32 %v983, %v1047
        %1049 = vmatmul.f32.gmra.mxu0 %v204
        %v1050 = vpop.f32.mrf.mxu0
        %v1051 = vadd.f32 %v986, %v1050
        %1052 = vmatmul.f32.gmra.mxu0 %v209
        %v1053 = vpop.f32.mrf.mxu0
        %v1054 = vadd.f32 %v989, %v1053
        %1055 = vmatmul.f32.gmra.mxu0 %v214
        %v1056 = vpop.f32.mrf.mxu0
        %v1057 = vadd.f32 %v992, %v1056
        %1058 = vmatmul.f32.gmra.mxu0 %v219
        %v1059 = vpop.f32.mrf.mxu0
        %v1060 = vadd.f32 %v995, %v1059
        %1061 = vmatmul.f32.gmra.mxu0 %v224
        %v1062 = vpop.f32.mrf.mxu0
        %v1063 = vadd.f32 %v998, %v1062
        %1064 = vmatmul.f32.gmra.mxu0 %v229
        %v1065 = vpop.f32.mrf.mxu0
        %v1066 = vadd.f32 %v1001, %v1065
        %1067 = vmatmul.f32.gmra.mxu0 %v234
        %v1068 = vpop.f32.mrf.mxu0
        %v1069 = vadd.f32 %v1004, %v1068
        %1070 = vmatmul.f32.gmra.mxu0 %v239
        %v1071 = vpop.f32.mrf.mxu0
        %v1072 = vadd.f32 %v1007, %v1071
        %1073 = vmatmul.f32.gmra.mxu0 %v244
        %v1074 = vpop.f32.mrf.mxu0
        %v1075 = vadd.f32 %v1010, %v1074
        %1076 = vmatmul.f32.gmra.mxu0 %v249
        %v1077 = vpop.f32.mrf.mxu0
        %v1078 = vadd.f32 %v1013, %v1077
        %1079 = vmatmul.f32.gmra.mxu0 %v254
        %v1080 = vpop.f32.mrf.mxu0
        %v1081 = vadd.f32 %v1016, %v1080
        %1082 = vmatmul.f32.gmra.mxu0 %v259
        %v1083 = vpop.f32.mrf.mxu0
        %v1084 = vadd.f32 %v1019, %v1083
        %1085 = vdwg.mxu0
        %1086 = vmatpush.msra.mxu0 %v499
        %1087 = vmatpush.msra.mxu0 %v496
        %1088 = vmatpush.msra.mxu0 %v493
        %1089 = vmatpush.msra.mxu0 %v490
        %1090 = vmatpush.msra.mxu0 %v487
        %1091 = vmatpush.msra.mxu0 %v484
        %1092 = vmatpush.msra.mxu0 %v481
        %1093 = vmatpush.msra.mxu0 %v478
        %1094 = vmatpush.msra.mxu0 %v475
        %1095 = vmatpush.msra.mxu0 %v472
        %1096 = vmatpush.msra.mxu0 %v469
        %1097 = vmatpush.msra.mxu0 %v466
        %1098 = vmatpush.msra.mxu0 %v463
        %1099 = vmatpush.msra.mxu0 %v460
        %1100 = vmatpush.msra.mxu0 %v457
        %1101 = vmatpush.msra.mxu0 %v454
        %1102 = vmatmul.f32.gmra.mxu0 %v185
        %v1103 = vpop.f32.mrf.mxu0
        %v1104 = vadd.f32 %v1039, %v1103
        %1105 = vmatmul.f32.gmra.mxu0 %v190
        %v1106 = vpop.f32.mrf.mxu0
        %v1107 = vadd.f32 %v1042, %v1106
        %1108 = vmatmul.f32.gmra.mxu0 %v195
        %v1109 = vpop.f32.mrf.mxu0
        %v1110 = vadd.f32 %v1045, %v1109
        %1111 = vmatmul.f32.gmra.mxu0 %v200
        %v1112 = vpop.f32.mrf.mxu0
        %v1113 = vadd.f32 %v1048, %v1112
        %1114 = vmatmul.f32.gmra.mxu0 %v205
        %v1115 = vpop.f32.mrf.mxu0
        %v1116 = vadd.f32 %v1051, %v1115
        %1117 = vmatmul.f32.gmra.mxu0 %v210
        %v1118 = vpop.f32.mrf.mxu0
        %v1119 = vadd.f32 %v1054, %v1118
        %1120 = vmatmul.f32.gmra.mxu0 %v215
        %v1121 = vpop.f32.mrf.mxu0
        %v1122 = vadd.f32 %v1057, %v1121
        %1123 = vmatmul.f32.gmra.mxu0 %v220
        %v1124 = vpop.f32.mrf.mxu0
        %v1125 = vadd.f32 %v1060, %v1124
        %1126 = vmatmul.f32.gmra.mxu0 %v225
        %v1127 = vpop.f32.mrf.mxu0
        %v1128 = vadd.f32 %v1063, %v1127
        %1129 = vmatmul.f32.gmra.mxu0 %v230
        %v1130 = vpop.f32.mrf.mxu0
        %v1131 = vadd.f32 %v1066, %v1130
        %1132 = vmatmul.f32.gmra.mxu0 %v235
        %v1133 = vpop.f32.mrf.mxu0
        %v1134 = vadd.f32 %v1069, %v1133
        %1135 = vmatmul.f32.gmra.mxu0 %v240
        %v1136 = vpop.f32.mrf.mxu0
        %v1137 = vadd.f32 %v1072, %v1136
        %1138 = vmatmul.f32.gmra.mxu0 %v245
        %v1139 = vpop.f32.mrf.mxu0
        %v1140 = vadd.f32 %v1075, %v1139
        %1141 = vmatmul.f32.gmra.mxu0 %v250
        %v1142 = vpop.f32.mrf.mxu0
        %v1143 = vadd.f32 %v1078, %v1142
        %1144 = vmatmul.f32.gmra.mxu0 %v255
        %v1145 = vpop.f32.mrf.mxu0
        %v1146 = vadd.f32 %v1081, %v1145
        %1147 = vmatmul.f32.gmra.mxu0 %v260
        %v1148 = vpop.f32.mrf.mxu0
        %v1149 = vadd.f32 %v1084, %v1148
        %1150 = vdwg.mxu0
        %1151 = vmatpush.msra.mxu0 %v308
        %1152 = vmatpush.msra.mxu0 %v305
        %1153 = vmatpush.msra.mxu0 %v302
        %1154 = vmatpush.msra.mxu0 %v299
        %1155 = vmatpush.msra.mxu0 %v296
        %1156 = vmatpush.msra.mxu0 %v293
        %1157 = vmatpush.msra.mxu0 %v290
        %1158 = vmatpush.msra.mxu0 %v287
        %1159 = vmatpush.msra.mxu0 %v284
        %1160 = vmatpush.msra.mxu0 %v281
        %1161 = vmatpush.msra.mxu0 %v278
        %1162 = vmatpush.msra.mxu0 %v275
        %1163 = vmatpush.msra.mxu0 %v272
        %1164 = vmatpush.msra.mxu0 %v269
        %1165 = vmatpush.msra.mxu0 %v266
        %1166 = vmatpush.msra.mxu0 %v263
        %1167 = vmatmul.f32.gmra.mxu0 %v181
        %v1168 = vpop.f32.mrf.mxu0
        %v1169 = vadd.f32 0.0, %v1168
        %1170 = vmatmul.f32.gmra.mxu0 %v186
        %v1171 = vpop.f32.mrf.mxu0
        %v1172 = vadd.f32 0.0, %v1171
        %1173 = vmatmul.f32.gmra.mxu0 %v191
        %v1174 = vpop.f32.mrf.mxu0
        %v1175 = vadd.f32 0.0, %v1174
        %1176 = vmatmul.f32.gmra.mxu0 %v196
        %v1177 = vpop.f32.mrf.mxu0
        %v1178 = vadd.f32 0.0, %v1177
        %1179 = vmatmul.f32.gmra.mxu0 %v201
        %v1180 = vpop.f32.mrf.mxu0
        %v1181 = vadd.f32 0.0, %v1180
        %1182 = vmatmul.f32.gmra.mxu0 %v206
        %v1183 = vpop.f32.mrf.mxu0
        %v1184 = vadd.f32 0.0, %v1183
        %1185 = vmatmul.f32.gmra.mxu0 %v211
        %v1186 = vpop.f32.mrf.mxu0
        %v1187 = vadd.f32 0.0, %v1186
        %1188 = vmatmul.f32.gmra.mxu0 %v216
        %v1189 = vpop.f32.mrf.mxu0
        %v1190 = vadd.f32 0.0, %v1189
        %1191 = vmatmul.f32.gmra.mxu0 %v221
        %v1192 = vpop.f32.mrf.mxu0
        %v1193 = vadd.f32 0.0, %v1192
        %1194 = vmatmul.f32.gmra.mxu0 %v226
        %v1195 = vpop.f32.mrf.mxu0
        %v1196 = vadd.f32 0.0, %v1195
        %1197 = vmatmul.f32.gmra.mxu0 %v231
        %v1198 = vpop.f32.mrf.mxu0
        %v1199 = vadd.f32 0.0, %v1198
        %1200 = vmatmul.f32.gmra.mxu0 %v236
        %v1201 = vpop.f32.mrf.mxu0
        %v1202 = vadd.f32 0.0, %v1201
        %1203 = vmatmul.f32.gmra.mxu0 %v241
        %v1204 = vpop.f32.mrf.mxu0
        %v1205 = vadd.f32 0.0, %v1204
        %1206 = vmatmul.f32.gmra.mxu0 %v246
        %v1207 = vpop.f32.mrf.mxu0
        %v1208 = vadd.f32 0.0, %v1207
        %1209 = vmatmul.f32.gmra.mxu0 %v251
        %v1210 = vpop.f32.mrf.mxu0
        %v1211 = vadd.f32 0.0, %v1210
        %1212 = vmatmul.f32.gmra.mxu0 %v256
        %v1213 = vpop.f32.mrf.mxu0
        %v1214 = vadd.f32 0.0, %v1213
        %1215 = vdwg.mxu0
        %1216 = vmatpush.msra.mxu0 %v356
        %1217 = vmatpush.msra.mxu0 %v353
        %1218 = vmatpush.msra.mxu0 %v350
        %1219 = vmatpush.msra.mxu0 %v347
        %1220 = vmatpush.msra.mxu0 %v344
        %1221 = vmatpush.msra.mxu0 %v341
        %1222 = vmatpush.msra.mxu0 %v338
        %1223 = vmatpush.msra.mxu0 %v335
        %1224 = vmatpush.msra.mxu0 %v332
        %1225 = vmatpush.msra.mxu0 %v329
        %1226 = vmatpush.msra.mxu0 %v326
        %1227 = vmatpush.msra.mxu0 %v323
        %1228 = vmatpush.msra.mxu0 %v320
        %1229 = vmatpush.msra.mxu0 %v317
        %1230 = vmatpush.msra.mxu0 %v314
        %1231 = vmatpush.msra.mxu0 %v311
        %1232 = vmatmul.f32.gmra.mxu0 %v182
        %v1233 = vpop.f32.mrf.mxu0
        %v1234 = vadd.f32 %v1169, %v1233
        %1235 = vmatmul.f32.gmra.mxu0 %v187
        %v1236 = vpop.f32.mrf.mxu0
        %v1237 = vadd.f32 %v1172, %v1236
        %1238 = vmatmul.f32.gmra.mxu0 %v192
        %v1239 = vpop.f32.mrf.mxu0
        %v1240 = vadd.f32 %v1175, %v1239
        %1241 = vmatmul.f32.gmra.mxu0 %v197
        %v1242 = vpop.f32.mrf.mxu0
        %v1243 = vadd.f32 %v1178, %v1242
        %1244 = vmatmul.f32.gmra.mxu0 %v202
        %v1245 = vpop.f32.mrf.mxu0
        %v1246 = vadd.f32 %v1181, %v1245
        %1247 = vmatmul.f32.gmra.mxu0 %v207
        %v1248 = vpop.f32.mrf.mxu0
        %v1249 = vadd.f32 %v1184, %v1248
        %1250 = vmatmul.f32.gmra.mxu0 %v212
        %v1251 = vpop.f32.mrf.mxu0
        %v1252 = vadd.f32 %v1187, %v1251
        %1253 = vmatmul.f32.gmra.mxu0 %v217
        %v1254 = vpop.f32.mrf.mxu0
        %v1255 = vadd.f32 %v1190, %v1254
        %1256 = vmatmul.f32.gmra.mxu0 %v222
        %v1257 = vpop.f32.mrf.mxu0
        %v1258 = vadd.f32 %v1193, %v1257
        %1259 = vmatmul.f32.gmra.mxu0 %v227
        %v1260 = vpop.f32.mrf.mxu0
        %v1261 = vadd.f32 %v1196, %v1260
        %1262 = vmatmul.f32.gmra.mxu0 %v232
        %v1263 = vpop.f32.mrf.mxu0
        %v1264 = vadd.f32 %v1199, %v1263
        %1265 = vmatmul.f32.gmra.mxu0 %v237
        %v1266 = vpop.f32.mrf.mxu0
        %v1267 = vadd.f32 %v1202, %v1266
        %1268 = vmatmul.f32.gmra.mxu0 %v242
        %v1269 = vpop.f32.mrf.mxu0
        %v1270 = vadd.f32 %v1205, %v1269
        %1271 = vmatmul.f32.gmra.mxu0 %v247
        %v1272 = vpop.f32.mrf.mxu0
        %v1273 = vadd.f32 %v1208, %v1272
        %1274 = vmatmul.f32.gmra.mxu0 %v252
        %v1275 = vpop.f32.mrf.mxu0
        %v1276 = vadd.f32 %v1211, %v1275
        %1277 = vmatmul.f32.gmra.mxu0 %v257
        %v1278 = vpop.f32.mrf.mxu0
        %v1279 = vadd.f32 %v1214, %v1278
        %1280 = vdwg.mxu0
        %1281 = vmatpush.msra.mxu0 %v404
        %1282 = vmatpush.msra.mxu0 %v401
        %1283 = vmatpush.msra.mxu0 %v398
        %1284 = vmatpush.msra.mxu0 %v395
        %1285 = vmatpush.msra.mxu0 %v392
        %1286 = vmatpush.msra.mxu0 %v389
        %1287 = vmatpush.msra.mxu0 %v386
        %1288 = vmatpush.msra.mxu0 %v383
        %1289 = vmatpush.msra.mxu0 %v380
        %1290 = vmatpush.msra.mxu0 %v377
        %1291 = vmatpush.msra.mxu0 %v374
        %1292 = vmatpush.msra.mxu0 %v371
        %1293 = vmatpush.msra.mxu0 %v368
        %1294 = vmatpush.msra.mxu0 %v365
        %1295 = vmatpush.msra.mxu0 %v362
        %1296 = vmatpush.msra.mxu0 %v359
        %1297 = vmatmul.f32.gmra.mxu0 %v183
        %v1298 = vpop.f32.mrf.mxu0
        %v1299 = vadd.f32 %v1234, %v1298
        %1300 = vmatmul.f32.gmra.mxu0 %v188
        %v1301 = vpop.f32.mrf.mxu0
        %v1302 = vadd.f32 %v1237, %v1301
        %1303 = vmatmul.f32.gmra.mxu0 %v193
        %v1304 = vpop.f32.mrf.mxu0
        %v1305 = vadd.f32 %v1240, %v1304
        %1306 = vmatmul.f32.gmra.mxu0 %v198
        %v1307 = vpop.f32.mrf.mxu0
        %v1308 = vadd.f32 %v1243, %v1307
        %1309 = vmatmul.f32.gmra.mxu0 %v203
        %v1310 = vpop.f32.mrf.mxu0
        %v1311 = vadd.f32 %v1246, %v1310
        %1312 = vmatmul.f32.gmra.mxu0 %v208
        %v1313 = vpop.f32.mrf.mxu0
        %v1314 = vadd.f32 %v1249, %v1313
        %1315 = vmatmul.f32.gmra.mxu0 %v213
        %v1316 = vpop.f32.mrf.mxu0
        %v1317 = vadd.f32 %v1252, %v1316
        %1318 = vmatmul.f32.gmra.mxu0 %v218
        %v1319 = vpop.f32.mrf.mxu0
        %v1320 = vadd.f32 %v1255, %v1319
        %1321 = vmatmul.f32.gmra.mxu0 %v223
        %v1322 = vpop.f32.mrf.mxu0
        %v1323 = vadd.f32 %v1258, %v1322
        %1324 = vmatmul.f32.gmra.mxu0 %v228
        %v1325 = vpop.f32.mrf.mxu0
        %v1326 = vadd.f32 %v1261, %v1325
        %1327 = vmatmul.f32.gmra.mxu0 %v233
        %v1328 = vpop.f32.mrf.mxu0
        %v1329 = vadd.f32 %v1264, %v1328
        %1330 = vmatmul.f32.gmra.mxu0 %v238
        %v1331 = vpop.f32.mrf.mxu0
        %v1332 = vadd.f32 %v1267, %v1331
        %1333 = vmatmul.f32.gmra.mxu0 %v243
        %v1334 = vpop.f32.mrf.mxu0
        %v1335 = vadd.f32 %v1270, %v1334
        %1336 = vmatmul.f32.gmra.mxu0 %v248
        %v1337 = vpop.f32.mrf.mxu0
        %v1338 = vadd.f32 %v1273, %v1337
        %1339 = vmatmul.f32.gmra.mxu0 %v253
        %v1340 = vpop.f32.mrf.mxu0
        %v1341 = vadd.f32 %v1276, %v1340
        %1342 = vmatmul.f32.gmra.mxu0 %v258
        %v1343 = vpop.f32.mrf.mxu0
        %v1344 = vadd.f32 %v1279, %v1343
        %1345 = vdwg.mxu0
        %1346 = vmatpush.msra.mxu0 %v452
        %1347 = vmatpush.msra.mxu0 %v449
        %1348 = vmatpush.msra.mxu0 %v446
        %1349 = vmatpush.msra.mxu0 %v443
        %1350 = vmatpush.msra.mxu0 %v440
        %1351 = vmatpush.msra.mxu0 %v437
        %1352 = vmatpush.msra.mxu0 %v434
        %1353 = vmatpush.msra.mxu0 %v431
        %1354 = vmatpush.msra.mxu0 %v428
        %1355 = vmatpush.msra.mxu0 %v425
        %1356 = vmatpush.msra.mxu0 %v422
        %1357 = vmatpush.msra.mxu0 %v419
        %1358 = vmatpush.msra.mxu0 %v416
        %1359 = vmatpush.msra.mxu0 %v413
        %1360 = vmatpush.msra.mxu0 %v410
        %1361 = vmatpush.msra.mxu0 %v407
        %1362 = vmatmul.f32.gmra.mxu0 %v184
        %v1363 = vpop.f32.mrf.mxu0
        %v1364 = vadd.f32 %v1299, %v1363
        %1365 = vmatmul.f32.gmra.mxu0 %v189
        %v1366 = vpop.f32.mrf.mxu0
        %v1367 = vadd.f32 %v1302, %v1366
        %1368 = vmatmul.f32.gmra.mxu0 %v194
        %v1369 = vpop.f32.mrf.mxu0
        %v1370 = vadd.f32 %v1305, %v1369
        %1371 = vmatmul.f32.gmra.mxu0 %v199
        %v1372 = vpop.f32.mrf.mxu0
        %v1373 = vadd.f32 %v1308, %v1372
        %1374 = vmatmul.f32.gmra.mxu0 %v204
        %v1375 = vpop.f32.mrf.mxu0
        %v1376 = vadd.f32 %v1311, %v1375
        %1377 = vmatmul.f32.gmra.mxu0 %v209
        %v1378 = vpop.f32.mrf.mxu0
        %v1379 = vadd.f32 %v1314, %v1378
        %1380 = vmatmul.f32.gmra.mxu0 %v214
        %v1381 = vpop.f32.mrf.mxu0
        %v1382 = vadd.f32 %v1317, %v1381
        %1383 = vmatmul.f32.gmra.mxu0 %v219
        %v1384 = vpop.f32.mrf.mxu0
        %v1385 = vadd.f32 %v1320, %v1384
        %1386 = vmatmul.f32.gmra.mxu0 %v224
        %v1387 = vpop.f32.mrf.mxu0
        %v1388 = vadd.f32 %v1323, %v1387
        %1389 = vmatmul.f32.gmra.mxu0 %v229
        %v1390 = vpop.f32.mrf.mxu0
        %v1391 = vadd.f32 %v1326, %v1390
        %1392 = vmatmul.f32.gmra.mxu0 %v234
        %v1393 = vpop.f32.mrf.mxu0
        %v1394 = vadd.f32 %v1329, %v1393
        %1395 = vmatmul.f32.gmra.mxu0 %v239
        %v1396 = vpop.f32.mrf.mxu0
        %v1397 = vadd.f32 %v1332, %v1396
        %1398 = vmatmul.f32.gmra.mxu0 %v244
        %v1399 = vpop.f32.mrf.mxu0
        %v1400 = vadd.f32 %v1335, %v1399
        %1401 = vmatmul.f32.gmra.mxu0 %v249
        %v1402 = vpop.f32.mrf.mxu0
        %v1403 = vadd.f32 %v1338, %v1402
        %1404 = vmatmul.f32.gmra.mxu0 %v254
        %v1405 = vpop.f32.mrf.mxu0
        %v1406 = vadd.f32 %v1341, %v1405
        %1407 = vmatmul.f32.gmra.mxu0 %v259
        %v1408 = vpop.f32.mrf.mxu0
        %v1409 = vadd.f32 %v1344, %v1408
        %1410 = vdwg.mxu0
        %1411 = vmatpush.msra.mxu0 %v500
        %1412 = vmatpush.msra.mxu0 %v497
        %1413 = vmatpush.msra.mxu0 %v494
        %1414 = vmatpush.msra.mxu0 %v491
        %1415 = vmatpush.msra.mxu0 %v488
        %1416 = vmatpush.msra.mxu0 %v485
        %1417 = vmatpush.msra.mxu0 %v482
        %1418 = vmatpush.msra.mxu0 %v479
        %1419 = vmatpush.msra.mxu0 %v476
        %1420 = vmatpush.msra.mxu0 %v473
        %1421 = vmatpush.msra.mxu0 %v470
        %1422 = vmatpush.msra.mxu0 %v467
        %1423 = vmatpush.msra.mxu0 %v464
        %1424 = vmatpush.msra.mxu0 %v461
        %1425 = vmatpush.msra.mxu0 %v458
        %1426 = vmatpush.msra.mxu0 %v455
        %1427 = vmatmul.f32.gmra.mxu0 %v185
        %v1428 = vpop.f32.mrf.mxu0
        %v1429 = vadd.f32 %v1364, %v1428
        %1430 = vmatmul.f32.gmra.mxu0 %v190
        %v1431 = vpop.f32.mrf.mxu0
        %v1432 = vadd.f32 %v1367, %v1431
        %1433 = vmatmul.f32.gmra.mxu0 %v195
        %v1434 = vpop.f32.mrf.mxu0
        %v1435 = vadd.f32 %v1370, %v1434
        %1436 = vmatmul.f32.gmra.mxu0 %v200
        %v1437 = vpop.f32.mrf.mxu0
        %v1438 = vadd.f32 %v1373, %v1437
        %1439 = vmatmul.f32.gmra.mxu0 %v205
        %v1440 = vpop.f32.mrf.mxu0
        %v1441 = vadd.f32 %v1376, %v1440
        %1442 = vmatmul.f32.gmra.mxu0 %v210
        %v1443 = vpop.f32.mrf.mxu0
        %v1444 = vadd.f32 %v1379, %v1443
        %1445 = vmatmul.f32.gmra.mxu0 %v215
        %v1446 = vpop.f32.mrf.mxu0
        %v1447 = vadd.f32 %v1382, %v1446
        %1448 = vmatmul.f32.gmra.mxu0 %v220
        %v1449 = vpop.f32.mrf.mxu0
        %v1450 = vadd.f32 %v1385, %v1449
        %1451 = vmatmul.f32.gmra.mxu0 %v225
        %v1452 = vpop.f32.mrf.mxu0
        %v1453 = vadd.f32 %v1388, %v1452
        %1454 = vmatmul.f32.gmra.mxu0 %v230
        %v1455 = vpop.f32.mrf.mxu0
        %v1456 = vadd.f32 %v1391, %v1455
        %1457 = vmatmul.f32.gmra.mxu0 %v235
        %v1458 = vpop.f32.mrf.mxu0
        %v1459 = vadd.f32 %v1394, %v1458
        %1460 = vmatmul.f32.gmra.mxu0 %v240
        %v1461 = vpop.f32.mrf.mxu0
        %v1462 = vadd.f32 %v1397, %v1461
        %1463 = vmatmul.f32.gmra.mxu0 %v245
        %v1464 = vpop.f32.mrf.mxu0
        %v1465 = vadd.f32 %v1400, %v1464
        %1466 = vmatmul.f32.gmra.mxu0 %v250
        %v1467 = vpop.f32.mrf.mxu0
        %v1468 = vadd.f32 %v1403, %v1467
        %1469 = vmatmul.f32.gmra.mxu0 %v255
        %v1470 = vpop.f32.mrf.mxu0
        %v1471 = vadd.f32 %v1406, %v1470
        %1472 = vmatmul.f32.gmra.mxu0 %v260
        %v1473 = vpop.f32.mrf.mxu0
        %v1474 = vadd.f32 %v1409, %v1473
        %1475 = vdwg.mxu0
        %v1476 = vlaneseq
        %v1477 = vshrl.u32 %v1476, 7
        %v1478 = vadd.s32 %v1477, 8
        %v1479 = vadd.s32 %v1477, 16
        %v1480 = vadd.s32 %v1477, 24
        %v1481 = vadd.s32 %v1477, 32
        %v1482 = vadd.s32 %v1477, 40
        %v1483 = vadd.s32 %v1477, 48
        %v1484 = vadd.s32 %v1477, 56
        %v1485 = vadd.s32 %v1477, 64
        %v1486 = vadd.s32 %v1477, 72
        %v1487 = vadd.s32 %v1477, 80
        %v1488 = vadd.s32 %v1477, 88
        %v1489 = vadd.s32 %v1477, 96
        %v1490 = vadd.s32 %v1477, 104
        %v1491 = vadd.s32 %v1477, 112
        %v1492 = vadd.s32 %v1477, 120
        %v1493 = vlaneseq
        %v1494 = vand.u32 %v1493, 127
        %vm1495 = vcmp.le.s32.totalorder %v1494, %v1477
        %vm1496 = vcmp.le.s32.totalorder %v1494, %v1478
        %vm1497 = vcmp.le.s32.totalorder %v1494, %v1479
        %vm1498 = vcmp.le.s32.totalorder %v1494, %v1480
        %vm1499 = vcmp.le.s32.totalorder %v1494, %v1481
        %vm1500 = vcmp.le.s32.totalorder %v1494, %v1482
        %vm1501 = vcmp.le.s32.totalorder %v1494, %v1483
        %vm1502 = vcmp.le.s32.totalorder %v1494, %v1484
        %vm1503 = vcmp.le.s32.totalorder %v1494, %v1485
        %vm1504 = vcmp.le.s32.totalorder %v1494, %v1486
        %vm1505 = vcmp.le.s32.totalorder %v1494, %v1487
        %vm1506 = vcmp.le.s32.totalorder %v1494, %v1488
        %vm1507 = vcmp.le.s32.totalorder %v1494, %v1489
        %vm1508 = vcmp.le.s32.totalorder %v1494, %v1490
        %vm1509 = vcmp.le.s32.totalorder %v1494, %v1491
        %vm1510 = vcmp.le.s32.totalorder %v1494, %v1492
        %1511 = vmatpush.xpose.msra.mxu0 %v1149
        %1512 = vmatpush.xpose.msra.mxu0 %v1146
        %1513 = vmatpush.xpose.msra.mxu0 %v1143
        %1514 = vmatpush.xpose.msra.mxu0 %v1140
        %1515 = vmatpush.xpose.msra.mxu0 %v1137
        %1516 = vmatpush.xpose.msra.mxu0 %v1134
        %1517 = vmatpush.xpose.msra.mxu0 %v1131
        %1518 = vmatpush.xpose.msra.mxu0 %v1128
        %1519 = vmatpush.xpose.msra.mxu0 %v1125
        %1520 = vmatpush.xpose.msra.mxu0 %v1122
        %1521 = vmatpush.xpose.msra.mxu0 %v1119
        %1522 = vmatpush.xpose.msra.mxu0 %v1116
        %1523 = vmatpush.xpose.msra.mxu0 %v1113
        %1524 = vmatpush.xpose.msra.mxu0 %v1110
        %1525 = vmatpush.xpose.msra.mxu0 %v1107
        %1526 = vmatpush.xpose.msra.mxu0 %v1104
        %1527 = vmatmul.f32.gmra.mxu0 %v779
        %v1528 = vpop.f32.mrf.mxu0
        %v1529 = vadd.f32 0.0, %v1528
        %1530 = vmatmul.f32.gmra.mxu0 %v782
        %v1531 = vpop.f32.mrf.mxu0
        %v1532 = vadd.f32 0.0, %v1531
        %1533 = vmatmul.f32.gmra.mxu0 %v785
        %v1534 = vpop.f32.mrf.mxu0
        %v1535 = vadd.f32 0.0, %v1534
        %1536 = vmatmul.f32.gmra.mxu0 %v788
        %v1537 = vpop.f32.mrf.mxu0
        %v1538 = vadd.f32 0.0, %v1537
        %1539 = vmatmul.f32.gmra.mxu0 %v791
        %v1540 = vpop.f32.mrf.mxu0
        %v1541 = vadd.f32 0.0, %v1540
        %1542 = vmatmul.f32.gmra.mxu0 %v794
        %v1543 = vpop.f32.mrf.mxu0
        %v1544 = vadd.f32 0.0, %v1543
        %1545 = vmatmul.f32.gmra.mxu0 %v797
        %v1546 = vpop.f32.mrf.mxu0
        %v1547 = vadd.f32 0.0, %v1546
        %1548 = vmatmul.f32.gmra.mxu0 %v800
        %v1549 = vpop.f32.mrf.mxu0
        %v1550 = vadd.f32 0.0, %v1549
        %1551 = vmatmul.f32.gmra.mxu0 %v803
        %v1552 = vpop.f32.mrf.mxu0
        %v1553 = vadd.f32 0.0, %v1552
        %1554 = vmatmul.f32.gmra.mxu0 %v806
        %v1555 = vpop.f32.mrf.mxu0
        %v1556 = vadd.f32 0.0, %v1555
        %1557 = vmatmul.f32.gmra.mxu0 %v809
        %v1558 = vpop.f32.mrf.mxu0
        %v1559 = vadd.f32 0.0, %v1558
        %1560 = vmatmul.f32.gmra.mxu0 %v812
        %v1561 = vpop.f32.mrf.mxu0
        %v1562 = vadd.f32 0.0, %v1561
        %1563 = vmatmul.f32.gmra.mxu0 %v815
        %v1564 = vpop.f32.mrf.mxu0
        %v1565 = vadd.f32 0.0, %v1564
        %1566 = vmatmul.f32.gmra.mxu0 %v818
        %v1567 = vpop.f32.mrf.mxu0
        %v1568 = vadd.f32 0.0, %v1567
        %1569 = vmatmul.f32.gmra.mxu0 %v821
        %v1570 = vpop.f32.mrf.mxu0
        %v1571 = vadd.f32 0.0, %v1570
        %1572 = vmatmul.f32.gmra.mxu0 %v824
        %v1573 = vpop.f32.mrf.mxu0
        %v1574 = vadd.f32 0.0, %v1573
        %1575 = vdwg.mxu0
        %v1576 = vmul.f32 %v1529, 0.088388346
        %v1577 = vmul.f32 %v1532, 0.088388346
        %v1578 = vmul.f32 %v1535, 0.088388346
        %v1579 = vmul.f32 %v1538, 0.088388346
        %v1580 = vmul.f32 %v1541, 0.088388346
        %v1581 = vmul.f32 %v1544, 0.088388346
        %v1582 = vmul.f32 %v1547, 0.088388346
        %v1583 = vmul.f32 %v1550, 0.088388346
        %v1584 = vmul.f32 %v1553, 0.088388346
        %v1585 = vmul.f32 %v1556, 0.088388346
        %v1586 = vmul.f32 %v1559, 0.088388346
        %v1587 = vmul.f32 %v1562, 0.088388346
        %v1588 = vmul.f32 %v1565, 0.088388346
        %v1589 = vmul.f32 %v1568, 0.088388346
        %v1590 = vmul.f32 %v1571, 0.088388346
        %v1591 = vmul.f32 %v1574, 0.088388346
        %v1592 = vsel %vm1495, %v1576, -1e+30
        %v1593 = vsel %vm1496, %v1577, -1e+30
        %v1594 = vsel %vm1497, %v1578, -1e+30
        %v1595 = vsel %vm1498, %v1579, -1e+30
        %v1596 = vsel %vm1499, %v1580, -1e+30
        %v1597 = vsel %vm1500, %v1581, -1e+30
        %v1598 = vsel %vm1501, %v1582, -1e+30
        %v1599 = vsel %vm1502, %v1583, -1e+30
        %v1600 = vsel %vm1503, %v1584, -1e+30
        %v1601 = vsel %vm1504, %v1585, -1e+30
        %v1602 = vsel %vm1505, %v1586, -1e+30
        %v1603 = vsel %vm1506, %v1587, -1e+30
        %v1604 = vsel %vm1507, %v1588, -1e+30
        %v1605 = vsel %vm1508, %v1589, -1e+30
        %v1606 = vsel %vm1509, %v1590, -1e+30
        %v1607 = vsel %vm1510, %v1591, -1e+30
        %1608 = vmax.xlane.f32.xlu0 %v1592
        %v1609 = vpop.xlane.xlu0 %1608
        %1610 = vmax.xlane.f32.xlu0 %v1593
        %v1611 = vpop.xlane.xlu0 %1610
        %1612 = vmax.xlane.f32.xlu0 %v1594
        %v1613 = vpop.xlane.xlu0 %1612
        %1614 = vmax.xlane.f32.xlu0 %v1595
        %v1615 = vpop.xlane.xlu0 %1614
        %1616 = vmax.xlane.f32.xlu0 %v1596
        %v1617 = vpop.xlane.xlu0 %1616
        %1618 = vmax.xlane.f32.xlu0 %v1597
        %v1619 = vpop.xlane.xlu0 %1618
        %1620 = vmax.xlane.f32.xlu0 %v1598
        %v1621 = vpop.xlane.xlu0 %1620
        %1622 = vmax.xlane.f32.xlu0 %v1599
        %v1623 = vpop.xlane.xlu0 %1622
        %1624 = vmax.xlane.f32.xlu0 %v1600
        %v1625 = vpop.xlane.xlu0 %1624
        %1626 = vmax.xlane.f32.xlu0 %v1601
        %v1627 = vpop.xlane.xlu0 %1626
        %1628 = vmax.xlane.f32.xlu0 %v1602
        %v1629 = vpop.xlane.xlu0 %1628
        %1630 = vmax.xlane.f32.xlu0 %v1603
        %v1631 = vpop.xlane.xlu0 %1630
        %1632 = vmax.xlane.f32.xlu0 %v1604
        %v1633 = vpop.xlane.xlu0 %1632
        %1634 = vmax.xlane.f32.xlu0 %v1605
        %v1635 = vpop.xlane.xlu0 %1634
        %1636 = vmax.xlane.f32.xlu0 %v1606
        %v1637 = vpop.xlane.xlu0 %1636
        %1638 = vmax.xlane.f32.xlu0 %v1607
        %v1639 = vpop.xlane.xlu0 %1638
        %v1640 = vsub.f32 %v1592, %v1609
        %v1641 = vsub.f32 %v1593, %v1611
        %v1642 = vsub.f32 %v1594, %v1613
        %v1643 = vsub.f32 %v1595, %v1615
        %v1644 = vsub.f32 %v1596, %v1617
        %v1645 = vsub.f32 %v1597, %v1619
        %v1646 = vsub.f32 %v1598, %v1621
        %v1647 = vsub.f32 %v1599, %v1623
        %v1648 = vsub.f32 %v1600, %v1625
        %v1649 = vsub.f32 %v1601, %v1627
        %v1650 = vsub.f32 %v1602, %v1629
        %v1651 = vsub.f32 %v1603, %v1631
        %v1652 = vsub.f32 %v1604, %v1633
        %v1653 = vsub.f32 %v1605, %v1635
        %v1654 = vsub.f32 %v1606, %v1637
        %v1655 = vsub.f32 %v1607, %v1639
        %v1656 = vmul.f32 %v1640, 1.442695
        %v1657 = vpow.pop %v1656
        %v1658 = vmul.f32 %v1641, 1.442695
        %v1659 = vpow.pop %v1658
        %v1660 = vmul.f32 %v1642, 1.442695
        %v1661 = vpow.pop %v1660
        %v1662 = vmul.f32 %v1643, 1.442695
        %v1663 = vpow.pop %v1662
        %v1664 = vmul.f32 %v1644, 1.442695
        %v1665 = vpow.pop %v1664
        %v1666 = vmul.f32 %v1645, 1.442695
        %v1667 = vpow.pop %v1666
        %v1668 = vmul.f32 %v1646, 1.442695
        %v1669 = vpow.pop %v1668
        %v1670 = vmul.f32 %v1647, 1.442695
        %v1671 = vpow.pop %v1670
        %v1672 = vmul.f32 %v1648, 1.442695
        %v1673 = vpow.pop %v1672
        %v1674 = vmul.f32 %v1649, 1.442695
        %v1675 = vpow.pop %v1674
        %v1676 = vmul.f32 %v1650, 1.442695
        %v1677 = vpow.pop %v1676
        %v1678 = vmul.f32 %v1651, 1.442695
        %v1679 = vpow.pop %v1678
        %v1680 = vmul.f32 %v1652, 1.442695
        %v1681 = vpow.pop %v1680
        %v1682 = vmul.f32 %v1653, 1.442695
        %v1683 = vpow.pop %v1682
        %v1684 = vmul.f32 %v1654, 1.442695
        %v1685 = vpow.pop %v1684
        %v1686 = vmul.f32 %v1655, 1.442695
        %v1687 = vpow.pop %v1686
        %1688 = vadd.xlane.f32.xlu0 %v1657
        %v1689 = vpop.xlane.xlu0 %1688
        %1690 = vadd.xlane.f32.xlu0 %v1659
        %v1691 = vpop.xlane.xlu0 %1690
        %1692 = vadd.xlane.f32.xlu0 %v1661
        %v1693 = vpop.xlane.xlu0 %1692
        %1694 = vadd.xlane.f32.xlu0 %v1663
        %v1695 = vpop.xlane.xlu0 %1694
        %1696 = vadd.xlane.f32.xlu0 %v1665
        %v1697 = vpop.xlane.xlu0 %1696
        %1698 = vadd.xlane.f32.xlu0 %v1667
        %v1699 = vpop.xlane.xlu0 %1698
        %1700 = vadd.xlane.f32.xlu0 %v1669
        %v1701 = vpop.xlane.xlu0 %1700
        %1702 = vadd.xlane.f32.xlu0 %v1671
        %v1703 = vpop.xlane.xlu0 %1702
        %1704 = vadd.xlane.f32.xlu0 %v1673
        %v1705 = vpop.xlane.xlu0 %1704
        %1706 = vadd.xlane.f32.xlu0 %v1675
        %v1707 = vpop.xlane.xlu0 %1706
        %1708 = vadd.xlane.f32.xlu0 %v1677
        %v1709 = vpop.xlane.xlu0 %1708
        %1710 = vadd.xlane.f32.xlu0 %v1679
        %v1711 = vpop.xlane.xlu0 %1710
        %1712 = vadd.xlane.f32.xlu0 %v1681
        %v1713 = vpop.xlane.xlu0 %1712
        %1714 = vadd.xlane.f32.xlu0 %v1683
        %v1715 = vpop.xlane.xlu0 %1714
        %1716 = vadd.xlane.f32.xlu0 %v1685
        %v1717 = vpop.xlane.xlu0 %1716
        %1718 = vadd.xlane.f32.xlu0 %v1687
        %v1719 = vpop.xlane.xlu0 %1718
        %1720 = vmatpush.msra.mxu0 %v1474
        %1721 = vmatpush.msra.mxu0 %v1471
        %1722 = vmatpush.msra.mxu0 %v1468
        %1723 = vmatpush.msra.mxu0 %v1465
        %1724 = vmatpush.msra.mxu0 %v1462
        %1725 = vmatpush.msra.mxu0 %v1459
        %1726 = vmatpush.msra.mxu0 %v1456
        %1727 = vmatpush.msra.mxu0 %v1453
        %1728 = vmatpush.msra.mxu0 %v1450
        %1729 = vmatpush.msra.mxu0 %v1447
        %1730 = vmatpush.msra.mxu0 %v1444
        %1731 = vmatpush.msra.mxu0 %v1441
        %1732 = vmatpush.msra.mxu0 %v1438
        %1733 = vmatpush.msra.mxu0 %v1435
        %1734 = vmatpush.msra.mxu0 %v1432
        %1735 = vmatpush.msra.mxu0 %v1429
        %1736 = vmatmul.f32.gmra.mxu0 %v1657
        %v1737 = vpop.f32.mrf.mxu0
        %v1738 = vadd.f32 0.0, %v1737
        %1739 = vmatmul.f32.gmra.mxu0 %v1659
        %v1740 = vpop.f32.mrf.mxu0
        %v1741 = vadd.f32 0.0, %v1740
        %1742 = vmatmul.f32.gmra.mxu0 %v1661
        %v1743 = vpop.f32.mrf.mxu0
        %v1744 = vadd.f32 0.0, %v1743
        %1745 = vmatmul.f32.gmra.mxu0 %v1663
        %v1746 = vpop.f32.mrf.mxu0
        %v1747 = vadd.f32 0.0, %v1746
        %1748 = vmatmul.f32.gmra.mxu0 %v1665
        %v1749 = vpop.f32.mrf.mxu0
        %v1750 = vadd.f32 0.0, %v1749
        %1751 = vmatmul.f32.gmra.mxu0 %v1667
        %v1752 = vpop.f32.mrf.mxu0
        %v1753 = vadd.f32 0.0, %v1752
        %1754 = vmatmul.f32.gmra.mxu0 %v1669
        %v1755 = vpop.f32.mrf.mxu0
        %v1756 = vadd.f32 0.0, %v1755
        %1757 = vmatmul.f32.gmra.mxu0 %v1671
        %v1758 = vpop.f32.mrf.mxu0
        %v1759 = vadd.f32 0.0, %v1758
        %1760 = vmatmul.f32.gmra.mxu0 %v1673
        %v1761 = vpop.f32.mrf.mxu0
        %v1762 = vadd.f32 0.0, %v1761
        %1763 = vmatmul.f32.gmra.mxu0 %v1675
        %v1764 = vpop.f32.mrf.mxu0
        %v1765 = vadd.f32 0.0, %v1764
        %1766 = vmatmul.f32.gmra.mxu0 %v1677
        %v1767 = vpop.f32.mrf.mxu0
        %v1768 = vadd.f32 0.0, %v1767
        %1769 = vmatmul.f32.gmra.mxu0 %v1679
        %v1770 = vpop.f32.mrf.mxu0
        %v1771 = vadd.f32 0.0, %v1770
        %1772 = vmatmul.f32.gmra.mxu0 %v1681
        %v1773 = vpop.f32.mrf.mxu0
        %v1774 = vadd.f32 0.0, %v1773
        %1775 = vmatmul.f32.gmra.mxu0 %v1683
        %v1776 = vpop.f32.mrf.mxu0
        %v1777 = vadd.f32 0.0, %v1776
        %1778 = vmatmul.f32.gmra.mxu0 %v1685
        %v1779 = vpop.f32.mrf.mxu0
        %v1780 = vadd.f32 0.0, %v1779
        %1781 = vmatmul.f32.gmra.mxu0 %v1687
        %v1782 = vpop.f32.mrf.mxu0
        %v1783 = vadd.f32 0.0, %v1782
        %1784 = vdwg.mxu0
        %v1785 = vrcp.pop %v1689
        %v1786 = vmul.f32 %v1689, %v1785
        %v1787 = vsub.f32 1.0, %v1786
        %v1788 = vmul.f32 %v1785, %v1787
        %v1789 = vadd.f32 %v1785, %v1788
        %vm1790 = vweird.f32 %v1689
        %vm1791 = vweird.f32 %v1785
        %vm1792 = vmor %vm1790, %vm1791
        %v1793 = vsel %vm1792, %v1785, %v1789
        %v1794 = vand.u32 2147483647, %v1689
        %vm1795 = vcmp.eq.f32.partialorder %v1794, 8.507059e+37
        %v1796 = vand.u32 %v1689, 2147483648
        %v1797 = vor.u32 1.1754944e-38, %v1796
        %v1798 = vsel %vm1795, %v1797, %v1793
        %v1799 = vmul.f32 %v1738, %v1798
        %v1800 = vrcp.pop %v1691
        %v1801 = vmul.f32 %v1691, %v1800
        %v1802 = vsub.f32 1.0, %v1801
        %v1803 = vmul.f32 %v1800, %v1802
        %v1804 = vadd.f32 %v1800, %v1803
        %vm1805 = vweird.f32 %v1691
        %vm1806 = vweird.f32 %v1800
        %vm1807 = vmor %vm1805, %vm1806
        %v1808 = vsel %vm1807, %v1800, %v1804
        %v1809 = vand.u32 2147483647, %v1691
        %vm1810 = vcmp.eq.f32.partialorder %v1809, 8.507059e+37
        %v1811 = vand.u32 %v1691, 2147483648
        %v1812 = vor.u32 1.1754944e-38, %v1811
        %v1813 = vsel %vm1810, %v1812, %v1808
        %v1814 = vmul.f32 %v1741, %v1813
        %v1815 = vrcp.pop %v1693
        %v1816 = vmul.f32 %v1693, %v1815
        %v1817 = vsub.f32 1.0, %v1816
        %v1818 = vmul.f32 %v1815, %v1817
        %v1819 = vadd.f32 %v1815, %v1818
        %vm1820 = vweird.f32 %v1693
        %vm1821 = vweird.f32 %v1815
        %vm1822 = vmor %vm1820, %vm1821
        %v1823 = vsel %vm1822, %v1815, %v1819
        %v1824 = vand.u32 2147483647, %v1693
        %vm1825 = vcmp.eq.f32.partialorder %v1824, 8.507059e+37
        %v1826 = vand.u32 %v1693, 2147483648
        %v1827 = vor.u32 1.1754944e-38, %v1826
        %v1828 = vsel %vm1825, %v1827, %v1823
        %v1829 = vmul.f32 %v1744, %v1828
        %v1830 = vrcp.pop %v1695
        %v1831 = vmul.f32 %v1695, %v1830
        %v1832 = vsub.f32 1.0, %v1831
        %v1833 = vmul.f32 %v1830, %v1832
        %v1834 = vadd.f32 %v1830, %v1833
        %vm1835 = vweird.f32 %v1695
        %vm1836 = vweird.f32 %v1830
        %vm1837 = vmor %vm1835, %vm1836
        %v1838 = vsel %vm1837, %v1830, %v1834
        %v1839 = vand.u32 2147483647, %v1695
        %vm1840 = vcmp.eq.f32.partialorder %v1839, 8.507059e+37
        %v1841 = vand.u32 %v1695, 2147483648
        %v1842 = vor.u32 1.1754944e-38, %v1841
        %v1843 = vsel %vm1840, %v1842, %v1838
        %v1844 = vmul.f32 %v1747, %v1843
        %v1845 = vrcp.pop %v1697
        %v1846 = vmul.f32 %v1697, %v1845
        %v1847 = vsub.f32 1.0, %v1846
        %v1848 = vmul.f32 %v1845, %v1847
        %v1849 = vadd.f32 %v1845, %v1848
        %vm1850 = vweird.f32 %v1697
        %vm1851 = vweird.f32 %v1845
        %vm1852 = vmor %vm1850, %vm1851
        %v1853 = vsel %vm1852, %v1845, %v1849
        %v1854 = vand.u32 2147483647, %v1697
        %vm1855 = vcmp.eq.f32.partialorder %v1854, 8.507059e+37
        %v1856 = vand.u32 %v1697, 2147483648
        %v1857 = vor.u32 1.1754944e-38, %v1856
        %v1858 = vsel %vm1855, %v1857, %v1853
        %v1859 = vmul.f32 %v1750, %v1858
        %v1860 = vrcp.pop %v1699
        %v1861 = vmul.f32 %v1699, %v1860
        %v1862 = vsub.f32 1.0, %v1861
        %v1863 = vmul.f32 %v1860, %v1862
        %v1864 = vadd.f32 %v1860, %v1863
        %vm1865 = vweird.f32 %v1699
        %vm1866 = vweird.f32 %v1860
        %vm1867 = vmor %vm1865, %vm1866
        %v1868 = vsel %vm1867, %v1860, %v1864
        %v1869 = vand.u32 2147483647, %v1699
        %vm1870 = vcmp.eq.f32.partialorder %v1869, 8.507059e+37
        %v1871 = vand.u32 %v1699, 2147483648
        %v1872 = vor.u32 1.1754944e-38, %v1871
        %v1873 = vsel %vm1870, %v1872, %v1868
        %v1874 = vmul.f32 %v1753, %v1873
        %v1875 = vrcp.pop %v1701
        %v1876 = vmul.f32 %v1701, %v1875
        %v1877 = vsub.f32 1.0, %v1876
        %v1878 = vmul.f32 %v1875, %v1877
        %v1879 = vadd.f32 %v1875, %v1878
        %vm1880 = vweird.f32 %v1701
        %vm1881 = vweird.f32 %v1875
        %vm1882 = vmor %vm1880, %vm1881
        %v1883 = vsel %vm1882, %v1875, %v1879
        %v1884 = vand.u32 2147483647, %v1701
        %vm1885 = vcmp.eq.f32.partialorder %v1884, 8.507059e+37
        %v1886 = vand.u32 %v1701, 2147483648
        %v1887 = vor.u32 1.1754944e-38, %v1886
        %v1888 = vsel %vm1885, %v1887, %v1883
        %v1889 = vmul.f32 %v1756, %v1888
        %v1890 = vrcp.pop %v1703
        %v1891 = vmul.f32 %v1703, %v1890
        %v1892 = vsub.f32 1.0, %v1891
        %v1893 = vmul.f32 %v1890, %v1892
        %v1894 = vadd.f32 %v1890, %v1893
        %vm1895 = vweird.f32 %v1703
        %vm1896 = vweird.f32 %v1890
        %vm1897 = vmor %vm1895, %vm1896
        %v1898 = vsel %vm1897, %v1890, %v1894
        %v1899 = vand.u32 2147483647, %v1703
        %vm1900 = vcmp.eq.f32.partialorder %v1899, 8.507059e+37
        %v1901 = vand.u32 %v1703, 2147483648
        %v1902 = vor.u32 1.1754944e-38, %v1901
        %v1903 = vsel %vm1900, %v1902, %v1898
        %v1904 = vmul.f32 %v1759, %v1903
        %v1905 = vrcp.pop %v1705
        %v1906 = vmul.f32 %v1705, %v1905
        %v1907 = vsub.f32 1.0, %v1906
        %v1908 = vmul.f32 %v1905, %v1907
        %v1909 = vadd.f32 %v1905, %v1908
        %vm1910 = vweird.f32 %v1705
        %vm1911 = vweird.f32 %v1905
        %vm1912 = vmor %vm1910, %vm1911
        %v1913 = vsel %vm1912, %v1905, %v1909
        %v1914 = vand.u32 2147483647, %v1705
        %vm1915 = vcmp.eq.f32.partialorder %v1914, 8.507059e+37
        %v1916 = vand.u32 %v1705, 2147483648
        %v1917 = vor.u32 1.1754944e-38, %v1916
        %v1918 = vsel %vm1915, %v1917, %v1913
        %v1919 = vmul.f32 %v1762, %v1918
        %v1920 = vrcp.pop %v1707
        %v1921 = vmul.f32 %v1707, %v1920
        %v1922 = vsub.f32 1.0, %v1921
        %v1923 = vmul.f32 %v1920, %v1922
        %v1924 = vadd.f32 %v1920, %v1923
        %vm1925 = vweird.f32 %v1707
        %vm1926 = vweird.f32 %v1920
        %vm1927 = vmor %vm1925, %vm1926
        %v1928 = vsel %vm1927, %v1920, %v1924
        %v1929 = vand.u32 2147483647, %v1707
        %vm1930 = vcmp.eq.f32.partialorder %v1929, 8.507059e+37
        %v1931 = vand.u32 %v1707, 2147483648
        %v1932 = vor.u32 1.1754944e-38, %v1931
        %v1933 = vsel %vm1930, %v1932, %v1928
        %v1934 = vmul.f32 %v1765, %v1933
        %v1935 = vrcp.pop %v1709
        %v1936 = vmul.f32 %v1709, %v1935
        %v1937 = vsub.f32 1.0, %v1936
        %v1938 = vmul.f32 %v1935, %v1937
        %v1939 = vadd.f32 %v1935, %v1938
        %vm1940 = vweird.f32 %v1709
        %vm1941 = vweird.f32 %v1935
        %vm1942 = vmor %vm1940, %vm1941
        %v1943 = vsel %vm1942, %v1935, %v1939
        %v1944 = vand.u32 2147483647, %v1709
        %vm1945 = vcmp.eq.f32.partialorder %v1944, 8.507059e+37
        %v1946 = vand.u32 %v1709, 2147483648
        %v1947 = vor.u32 1.1754944e-38, %v1946
        %v1948 = vsel %vm1945, %v1947, %v1943
        %v1949 = vmul.f32 %v1768, %v1948
        %v1950 = vrcp.pop %v1711
        %v1951 = vmul.f32 %v1711, %v1950
        %v1952 = vsub.f32 1.0, %v1951
        %v1953 = vmul.f32 %v1950, %v1952
        %v1954 = vadd.f32 %v1950, %v1953
        %vm1955 = vweird.f32 %v1711
        %vm1956 = vweird.f32 %v1950
        %vm1957 = vmor %vm1955, %vm1956
        %v1958 = vsel %vm1957, %v1950, %v1954
        %v1959 = vand.u32 2147483647, %v1711
        %vm1960 = vcmp.eq.f32.partialorder %v1959, 8.507059e+37
        %v1961 = vand.u32 %v1711, 2147483648
        %v1962 = vor.u32 1.1754944e-38, %v1961
        %v1963 = vsel %vm1960, %v1962, %v1958
        %v1964 = vmul.f32 %v1771, %v1963
        %v1965 = vrcp.pop %v1713
        %v1966 = vmul.f32 %v1713, %v1965
        %v1967 = vsub.f32 1.0, %v1966
        %v1968 = vmul.f32 %v1965, %v1967
        %v1969 = vadd.f32 %v1965, %v1968
        %vm1970 = vweird.f32 %v1713
        %vm1971 = vweird.f32 %v1965
        %vm1972 = vmor %vm1970, %vm1971
        %v1973 = vsel %vm1972, %v1965, %v1969
        %v1974 = vand.u32 2147483647, %v1713
        %vm1975 = vcmp.eq.f32.partialorder %v1974, 8.507059e+37
        %v1976 = vand.u32 %v1713, 2147483648
        %v1977 = vor.u32 1.1754944e-38, %v1976
        %v1978 = vsel %vm1975, %v1977, %v1973
        %v1979 = vmul.f32 %v1774, %v1978
        %v1980 = vrcp.pop %v1715
        %v1981 = vmul.f32 %v1715, %v1980
        %v1982 = vsub.f32 1.0, %v1981
        %v1983 = vmul.f32 %v1980, %v1982
        %v1984 = vadd.f32 %v1980, %v1983
        %vm1985 = vweird.f32 %v1715
        %vm1986 = vweird.f32 %v1980
        %vm1987 = vmor %vm1985, %vm1986
        %v1988 = vsel %vm1987, %v1980, %v1984
        %v1989 = vand.u32 2147483647, %v1715
        %vm1990 = vcmp.eq.f32.partialorder %v1989, 8.507059e+37
        %v1991 = vand.u32 %v1715, 2147483648
        %v1992 = vor.u32 1.1754944e-38, %v1991
        %v1993 = vsel %vm1990, %v1992, %v1988
        %v1994 = vmul.f32 %v1777, %v1993
        %v1995 = vrcp.pop %v1717
        %v1996 = vmul.f32 %v1717, %v1995
        %v1997 = vsub.f32 1.0, %v1996
        %v1998 = vmul.f32 %v1995, %v1997
        %v1999 = vadd.f32 %v1995, %v1998
        %vm2000 = vweird.f32 %v1717
        %vm2001 = vweird.f32 %v1995
        %vm2002 = vmor %vm2000, %vm2001
        %v2003 = vsel %vm2002, %v1995, %v1999
        %v2004 = vand.u32 2147483647, %v1717
        %vm2005 = vcmp.eq.f32.partialorder %v2004, 8.507059e+37
        %v2006 = vand.u32 %v1717, 2147483648
        %v2007 = vor.u32 1.1754944e-38, %v2006
        %v2008 = vsel %vm2005, %v2007, %v2003
        %v2009 = vmul.f32 %v1780, %v2008
        %v2010 = vrcp.pop %v1719
        %v2011 = vmul.f32 %v1719, %v2010
        %v2012 = vsub.f32 1.0, %v2011
        %v2013 = vmul.f32 %v2010, %v2012
        %v2014 = vadd.f32 %v2010, %v2013
        %vm2015 = vweird.f32 %v1719
        %vm2016 = vweird.f32 %v2010
        %vm2017 = vmor %vm2015, %vm2016
        %v2018 = vsel %vm2017, %v2010, %v2014
        %v2019 = vand.u32 2147483647, %v1719
        %vm2020 = vcmp.eq.f32.partialorder %v2019, 8.507059e+37
        %v2021 = vand.u32 %v1719, 2147483648
        %v2022 = vor.u32 1.1754944e-38, %v2021
        %v2023 = vsel %vm2020, %v2022, %v2018
        %v2024 = vmul.f32 %v1783, %v2023
        %2025 = vst [vmem:[%s180] sm:$0xff] %v1799
        %2026 = vst [vmem:[%s180 + $0x8] sm:$0xff] %v1814
        %2027 = vst [vmem:[%s180 + $0x10] sm:$0xff] %v1829
        %2028 = vst [vmem:[%s180 + $0x18] sm:$0xff] %v1844
        %2029 = vst [vmem:[%s180 + $0x20] sm:$0xff] %v1859
        %2030 = vst [vmem:[%s180 + $0x28] sm:$0xff] %v1874
        %2031 = vst [vmem:[%s180 + $0x30] sm:$0xff] %v1889
        %2032 = vst [vmem:[%s180 + $0x38] sm:$0xff] %v1904
        %2033 = vst [vmem:[%s180 + $0x40] sm:$0xff] %v1919
        %2034 = vst [vmem:[%s180 + $0x48] sm:$0xff] %v1934
        %2035 = vst [vmem:[%s180 + $0x50] sm:$0xff] %v1949
        %2036 = vst [vmem:[%s180 + $0x58] sm:$0xff] %v1964
        %2037 = vst [vmem:[%s180 + $0x60] sm:$0xff] %v1979
        %2038 = vst [vmem:[%s180 + $0x68] sm:$0xff] %v1994
        %2039 = vst [vmem:[%s180 + $0x70] sm:$0xff] %v2009
        %2040 = vst [vmem:[%s180 + $0x78] sm:$0xff] %v2024
        %s2041 = sand.u32 %s75, 1
        %s2042 = scalar_lea.sflag [#allocation4], %s2041
        %s2043 = sand.u32 %s75, 1
        %s2044 = smul.addr %s2043, 128
        %s2045 = scalar_lea.vmem [#allocation7], %s2044
        // Predicated region
        $region37: #{tpu_custom_call.1} parent=27 // pred_check
          %p2046 = pneg %p85
        $region38: #{tpu_custom_call.1} parent=27 // pred_check_branch
          %2048 = sbr.rel (%p2046) target = $region40
        $region39: #{tpu_custom_call.1} parent=27 // pred_region
          %2050 = vsyncadd %s2042, 0
          %s2051 = smul.addr %s20, 16
          %s2052 = smul.addr %s2051, 8
          %s2053 = scalar_lea.hbm %s2, %s2052
          %s2054 = sshll.u32 %s2045, 4
          %s2055 = int_to_ptr.vmem [resolvable:$true] %s2054
          %s2056 = sshll.u32 %s2053, 4
          %s2057 = int_to_ptr.hbm [resolvable:$true] %s2056
          %2062 = dma.vmem_to_hbm [thread:$0]  %s2055, 2048, %s2057, %s2042, 128, 128, 8
        $region40: #{tpu_custom_call.1} parent=27 // pred_fallthru
          _
      $region28: #{tpu_custom_call.1} parent=5 // pred_fallthru
        _
      %p2063 = scmp.le.s32.totalorder 2, %s15
      // Predicated region
      $region41: #{tpu_custom_call.1} parent=5 // pred_check
        %p2064 = pneg %p2063
      $region42: #{tpu_custom_call.1} parent=5 // pred_check_branch
        %2066 = sbr.rel (%p2064) target = $region44
      $region43: #{tpu_custom_call.1} parent=5 // pred_region
        %s2067 = ssub.s32 %s15, 2
        // Predicated region
        $region45: #{tpu_custom_call.1} parent=43 // pred_check
          %p2068 = pneg %p91
        $region46: #{tpu_custom_call.1} parent=43 // pred_check_branch
          %2070 = sbr.rel (%p2068) target = $region48
        $region47: #{tpu_custom_call.1} parent=43 // pred_region
          %s2071 = sand.u32 %s76, 1
          %s2072 = scalar_lea.sflag [#allocation4], %s2071
          %s2073 = sand.u32 %s76, 1
          %s2074 = smul.addr %s2073, 128
          %s2075 = scalar_lea.vmem [#allocation7], %s2074
          %2077 = dma.done %s2072, 2048
        $region48: #{tpu_custom_call.1} parent=43 // pred_fallthru
          _
      $region44: #{tpu_custom_call.1} parent=5 // pred_fallthru
        _
    $region6: #{tpu_custom_call.1} parent=1 // loop_footer
      %s19 = sadd.s32 1, %s15
    $region7: #{tpu_custom_call.1} parent=1 // loop_footer_branch
      %14 = sbr.rel target = $region3
    $region8: #{tpu_custom_call.1} parent=1 // loop_exit
      _
    %2078 = vsyncpa [#allocation3], 1
    %s2079 = scalar_lea.sflag [#allocation3], 1
    %2080 = vsyncpa %s2079, 1
    %2081 = vsyncpa [#allocation6], 1
    %2082 = vsyncpa [#allocation4], 1
    %s2083 = scalar_lea.sflag [#allocation4], 1
    %2084 = vsyncpa %s2083, 1

</llo_original>
